<compile_context>
chip_gen: v6e
topology: v6e:2x2x1
jax: 0.10.0
libtpu: 0.0.40
codegen_flags: <defaults>
</compile_context>

<pallas_src>
import functools

import numpy as np
import jax
import jax.numpy as jnp
from jax.experimental import pallas as pl
from jax.experimental.pallas import tpu as pltpu


def _downsample_kernel(s_ref, a_ref, x_ref, o_ref, *, K, Bblk):
    # s_ref: (K, Ho, Hp) f32 H-tap/stride selection matrices (grid-invariant, VMEM).
    # a_ref: (K, Wp, Wo) f32 folded W-tap/stride/weight matrices (grid-invariant, VMEM).
    # x_ref: (Bblk, Hp, Wp) block of reflect-padded images (VMEM).
    # o_ref: (Bblk, Ho, Wo) output block.
    # Hoist the (tiny) per-tap matrices out of the image loop (no re-loads per image).
    s_taps = [s_ref[u] for u in range(K)]
    a_taps = [a_ref[u] for u in range(K)]

    for b in range(Bblk):                    # static unroll over images in the block
        x_img = x_ref[b].astype(jnp.float32)             # (Hp, Wp)
        acc = None
        for u in range(K):                   # K row taps
            # W taps + W stride + weights folded into one MXU contraction over Wp.
            y = jnp.dot(x_img, a_taps[u],
                        preferred_element_type=jnp.float32)      # (Hp, Wo)
            # H stride-f tap selection as a second MXU contraction over Hp.
            part = jnp.dot(s_taps[u], y,
                           preferred_element_type=jnp.float32)   # (Ho, Wo)
            acc = part if acc is None else acc + part
        o_ref[b] = acc.astype(o_ref.dtype)
    # Bias of the PyTorch Conv2d is hard-set to 0 in __init__, so it is omitted.


class Downsampler2Pallas:
    """JAX/Pallas equivalent of models/downsampler_2.py::Downsampler_2.forward."""

    def __init__(self, factor, kernel, pad_mode="reflect"):
        kernel = np.asarray(kernel, np.float32)
        if kernel.shape[0] != kernel.shape[1]:
            raise ValueError("Only square kernels supported")
        if pad_mode != "reflect":
            # TODO(synk): only 'reflect' pad_mode implemented (matches default usage).
            raise NotImplementedError("only reflect padding supported")
        self.factor = int(factor)
        self.K = int(kernel.shape[0])
        center = self.K // 2
        self.pad_lt = center
        self.pad_rb = self.K - center - 1
        # PyTorch: conv weight <- kernel.flip(0,1); F.conv2d is cross-correlation,
        # so the effective op is cross-correlation with the flipped kernel.
        self._w_np = kernel[::-1, ::-1].copy()
        self.weight = jnp.asarray(self._w_np, jnp.float32)
        self._mat_cache = {}

    # ------------------------------------------------------------------ helpers
    def _tap_matrices(self, Hp, Wp, Ho, Wo):
        """S[u, ho, p] = 1 if p == f*ho + u ; A[u, q, wo] = w[u, q - f*wo] if valid."""
        key = (Hp, Wp, Ho, Wo)
        mats = self._mat_cache.get(key)
        if mats is None:
            f, K = self.factor, self.K
            S_np = np.zeros((K, Ho, Hp), np.float32)
            A_np = np.zeros((K, Wp, Wo), np.float32)
            h_idx = np.arange(Ho)
            w_rows = f * np.arange(Wo)
            w_cols = np.arange(Wo)
            for u in range(K):
                S_np[u, h_idx, f * h_idx + u] = 1.0
                for v in range(K):
                    A_np[u, w_rows + v, w_cols] = self._w_np[u, v]
            mats = (jnp.asarray(S_np), jnp.asarray(A_np))
            self._mat_cache[key] = mats
        return mats

    @staticmethod
    def _pick_block(NC, Hp, Wp, Ho, Wo):
        bytes_per_img = 4 * (Hp * Wp + Ho * Wo)
        # Keep the double-buffered working set well inside scoped VMEM on all gens
        # (v7x has only 64 MiB physical / 32 MiB default scoped).
        cap = max(1, (8 << 20) // (2 * bytes_per_img))
        cap = min(cap, 32)                      # bound static unroll per grid step
        if NC >= 2:
            cap = min(cap, max(1, NC // 2))     # keep >=2 grid steps for megacore
        return max(1, min(cap, NC))

    # ------------------------------------------------------------------ forward
    def __call__(self, x):
        N, C, H, W = x.shape
        f, K = self.factor, self.K
        Ho, Wo = H // f, W // f

        # Reflect padding (glue, outside the kernel).
        xp = jnp.pad(
            x,
            ((0, 0), (0, 0), (self.pad_lt, self.pad_rb), (self.pad_lt, self.pad_rb)),
            mode="reflect",
        )
        Hp, Wp = xp.shape[-2], xp.shape[-1]
        NC = N * C
        xpb = xp.reshape(NC, Hp, Wp)

        Bblk = self._pick_block(NC, Hp, Wp, Ho, Wo)
        NCp = ((NC + Bblk - 1) // Bblk) * Bblk
        if NCp != NC:
            xpb = jnp.pad(xpb, ((0, NCp - NC), (0, 0), (0, 0)))
        grid = (NCp // Bblk,)

        S, A = self._tap_matrices(Hp, Wp, Ho, Wo)

        kern = functools.partial(_downsample_kernel, K=K, Bblk=Bblk)

        out = pl.pallas_call(
            kern,
            grid=grid,
            in_specs=[
                # Grid-invariant folded tap matrices: stay VMEM-resident.
                pl.BlockSpec((K, Ho, Hp), lambda b: (0, 0, 0)),
                pl.BlockSpec((K, Wp, Wo), lambda b: (0, 0, 0)),
                # Bblk padded images per step.
                pl.BlockSpec((Bblk, Hp, Wp), lambda b: (b, 0, 0)),
            ],
            out_specs=pl.BlockSpec((Bblk, Ho, Wo), lambda b: (b, 0, 0)),
            out_shape=jax.ShapeDtypeStruct((NCp, Ho, Wo), x.dtype),
            compiler_params=pltpu.CompilerParams(
                dimension_semantics=("parallel",),
                vmem_limit_bytes=32 << 20,
            ),
        )(S, A, xpb)

        return out[:NC].reshape(N, C, Ho, Wo)


def _reference_forward(x, weight, factor, pad_lt, pad_rb):
    """Pure-JAX reference mirroring the PyTorch forward (for validation)."""
    N, C, H, W = x.shape
    K = weight.shape[0]
    Ho, Wo = H // factor, W // factor
    xp = jnp.pad(x, ((0, 0), (0, 0), (pad_lt, pad_rb), (pad_lt, pad_rb)),
                 mode="reflect")
    Hp, Wp = xp.shape[-2], xp.shape[-1]
    y = jax.lax.conv_general_dilated(
        xp.reshape(N * C, 1, Hp, Wp).astype(jnp.float32),
        weight.reshape(1, 1, K, K).astype(jnp.float32),
        window_strides=(factor, factor),
        padding="VALID",
        dimension_numbers=("NCHW", "OIHW", "NCHW"),
    )
    y = y.reshape(N, C, y.shape[-2], y.shape[-1])
    return y[:, :, :Ho, :Wo]


if __name__ == "__main__":
    # Deterministic synthetic parameters / inputs.
    factor = 2
    K = 4  # even kernel -> asymmetric reflect padding (2 left/top, 1 right/bottom)

    kkey = jax.random.PRNGKey(1)
    kernel2d = jax.random.uniform(kkey, (K, K), jnp.float32)
    kernel2d = kernel2d / jnp.sum(kernel2d)  # normalized anti-aliasing kernel

    xkey = jax.random.PRNGKey(0)
    x = jax.random.normal(xkey, (2, 4, 16, 16), jnp.float32)  # NCHW

    ds = Downsampler2Pallas(factor, kernel2d, pad_mode="reflect")
    y = jax.block_until_ready(ds(x))

    y_ref = jax.block_until_ready(
        _reference_forward(x, ds.weight, factor, ds.pad_lt, ds.pad_rb)
    )

    assert y.shape == (2, 4, 8, 8), y.shape
    assert jnp.allclose(y, y_ref, atol=1e-5, rtol=1e-5), float(
        jnp.max(jnp.abs(y - y_ref))
    )
    print("KERNEL_OK")
</pallas_src>

<mosaic_0001>
module attributes {stable_mosaic.version = 11 : i64} {
  func.func @_downsample_kernel(%arg0: i32, %arg1: memref<4x8x19xf32, #tpu.memory_space<vmem>>, %arg2: memref<4x19x8xf32, #tpu.memory_space<vmem>>, %arg3: memref<4x19x19xf32, #tpu.memory_space<vmem>>, %arg4: memref<4x8x8xf32, #tpu.memory_space<vmem>>) attributes {dimension_semantics = [#tpu.dimension_semantics<parallel>], iteration_bounds = array<i64: 2>, scalar_prefetch = 0 : i64, scratch_operands = 0 : i64, tpu.core_type = #tpu.core_type<tc>, window_params = [{pipeline_mode = #tpu.pipeline_mode<synchronous>, transform_indices = @transform_0, window_bounds = array<i64: 4, 8, 19>}, {pipeline_mode = #tpu.pipeline_mode<synchronous>, transform_indices = @transform_1, window_bounds = array<i64: 4, 19, 8>}, {transform_indices = @transform_2, window_bounds = array<i64: 4, 19, 19>}, {transform_indices = @transform_3, window_bounds = array<i64: 4, 8, 8>}]} {
    %c0 = arith.constant 0 : index
    %c0_0 = arith.constant 0 : index
    %c0_1 = arith.constant 0 : index
    %0 = vector.load %arg1[%c0, %c0_0, %c0_1] : memref<4x8x19xf32, #tpu.memory_space<vmem>>, vector<1x8x19xf32>
    %1 = vector.shape_cast %0 : vector<1x8x19xf32> to vector<8x19xf32>
    %c1 = arith.constant 1 : index
    %c0_2 = arith.constant 0 : index
    %c0_3 = arith.constant 0 : index
    %2 = vector.load %arg1[%c1, %c0_2, %c0_3] : memref<4x8x19xf32, #tpu.memory_space<vmem>>, vector<1x8x19xf32>
    %3 = vector.shape_cast %2 : vector<1x8x19xf32> to vector<8x19xf32>
    %c2 = arith.constant 2 : index
    %c0_4 = arith.constant 0 : index
    %c0_5 = arith.constant 0 : index
    %4 = vector.load %arg1[%c2, %c0_4, %c0_5] : memref<4x8x19xf32, #tpu.memory_space<vmem>>, vector<1x8x19xf32>
    %5 = vector.shape_cast %4 : vector<1x8x19xf32> to vector<8x19xf32>
    %c3 = arith.constant 3 : index
    %c0_6 = arith.constant 0 : index
    %c0_7 = arith.constant 0 : index
    %6 = vector.load %arg1[%c3, %c0_6, %c0_7] : memref<4x8x19xf32, #tpu.memory_space<vmem>>, vector<1x8x19xf32>
    %7 = vector.shape_cast %6 : vector<1x8x19xf32> to vector<8x19xf32>
    %c0_8 = arith.constant 0 : index
    %c0_9 = arith.constant 0 : index
    %c0_10 = arith.constant 0 : index
    %8 = vector.load %arg2[%c0_8, %c0_9, %c0_10] : memref<4x19x8xf32, #tpu.memory_space<vmem>>, vector<1x19x8xf32>
    %9 = vector.shape_cast %8 : vector<1x19x8xf32> to vector<19x8xf32>
    %c1_11 = arith.constant 1 : index
    %c0_12 = arith.constant 0 : index
    %c0_13 = arith.constant 0 : index
    %10 = vector.load %arg2[%c1_11, %c0_12, %c0_13] : memref<4x19x8xf32, #tpu.memory_space<vmem>>, vector<1x19x8xf32>
    %11 = vector.shape_cast %10 : vector<1x19x8xf32> to vector<19x8xf32>
    %c2_14 = arith.constant 2 : index
    %c0_15 = arith.constant 0 : index
    %c0_16 = arith.constant 0 : index
    %12 = vector.load %arg2[%c2_14, %c0_15, %c0_16] : memref<4x19x8xf32, #tpu.memory_space<vmem>>, vector<1x19x8xf32>
    %13 = vector.shape_cast %12 : vector<1x19x8xf32> to vector<19x8xf32>
    %c3_17 = arith.constant 3 : index
    %c0_18 = arith.constant 0 : index
    %c0_19 = arith.constant 0 : index
    %14 = vector.load %arg2[%c3_17, %c0_18, %c0_19] : memref<4x19x8xf32, #tpu.memory_space<vmem>>, vector<1x19x8xf32>
    %15 = vector.shape_cast %14 : vector<1x19x8xf32> to vector<19x8xf32>
    %c0_20 = arith.constant 0 : index
    %c0_21 = arith.constant 0 : index
    %c0_22 = arith.constant 0 : index
    %16 = vector.load %arg3[%c0_20, %c0_21, %c0_22] : memref<4x19x19xf32, #tpu.memory_space<vmem>>, vector<1x19x19xf32>
    %17 = vector.shape_cast %16 : vector<1x19x19xf32> to vector<19x19xf32>
    %cst = arith.constant dense<0.000000e+00> : vector<19x8xf32>
    %18 = tpu.matmul %17, %9, %cst {dimension_numbers = #tpu.dot_dimension_numbers<[1], [0], [0], [1], [0, 0, 1, 1], [], []>} : vector<19x19xf32>, vector<19x8xf32>, vector<19x8xf32> -> vector<19x8xf32>
    %cst_23 = arith.constant dense<0.000000e+00> : vector<8x8xf32>
    %19 = tpu.matmul %1, %18, %cst_23 {dimension_numbers = #tpu.dot_dimension_numbers<[1], [0], [0], [1], [0, 0, 1, 1], [], []>} : vector<8x19xf32>, vector<19x8xf32>, vector<8x8xf32> -> vector<8x8xf32>
    %cst_24 = arith.constant dense<0.000000e+00> : vector<19x8xf32>
    %20 = tpu.matmul %17, %11, %cst_24 {dimension_numbers = #tpu.dot_dimension_numbers<[1], [0], [0], [1], [0, 0, 1, 1], [], []>} : vector<19x19xf32>, vector<19x8xf32>, vector<19x8xf32> -> vector<19x8xf32>
    %cst_25 = arith.constant dense<0.000000e+00> : vector<8x8xf32>
    %21 = tpu.matmul %3, %20, %cst_25 {dimension_numbers = #tpu.dot_dimension_numbers<[1], [0], [0], [1], [0, 0, 1, 1], [], []>} : vector<8x19xf32>, vector<19x8xf32>, vector<8x8xf32> -> vector<8x8xf32>
    %22 = arith.addf %19, %21 : vector<8x8xf32>
    %cst_26 = arith.constant dense<0.000000e+00> : vector<19x8xf32>
    %23 = tpu.matmul %17, %13, %cst_26 {dimension_numbers = #tpu.dot_dimension_numbers<[1], [0], [0], [1], [0, 0, 1, 1], [], []>} : vector<19x19xf32>, vector<19x8xf32>, vector<19x8xf32> -> vector<19x8xf32>
    %cst_27 = arith.constant dense<0.000000e+00> : vector<8x8xf32>
    %24 = tpu.matmul %5, %23, %cst_27 {dimension_numbers = #tpu.dot_dimension_numbers<[1], [0], [0], [1], [0, 0, 1, 1], [], []>} : vector<8x19xf32>, vector<19x8xf32>, vector<8x8xf32> -> vector<8x8xf32>
    %25 = arith.addf %22, %24 : vector<8x8xf32>
    %cst_28 = arith.constant dense<0.000000e+00> : vector<19x8xf32>
    %26 = tpu.matmul %17, %15, %cst_28 {dimension_numbers = #tpu.dot_dimension_numbers<[1], [0], [0], [1], [0, 0, 1, 1], [], []>} : vector<19x19xf32>, vector<19x8xf32>, vector<19x8xf32> -> vector<19x8xf32>
    %cst_29 = arith.constant dense<0.000000e+00> : vector<8x8xf32>
    %27 = tpu.matmul %7, %26, %cst_29 {dimension_numbers = #tpu.dot_dimension_numbers<[1], [0], [0], [1], [0, 0, 1, 1], [], []>} : vector<8x19xf32>, vector<19x8xf32>, vector<8x8xf32> -> vector<8x8xf32>
    %28 = arith.addf %25, %27 : vector<8x8xf32>
    %c0_30 = arith.constant 0 : index
    %c0_31 = arith.constant 0 : index
    %c0_32 = arith.constant 0 : index
    %29 = vector.load %arg4[%c0_30, %c0_31, %c0_32] : memref<4x8x8xf32, #tpu.memory_space<vmem>>, vector<1x8x8xf32>
    %30 = vector.shape_cast %29 : vector<1x8x8xf32> to vector<8x8xf32>
    %31 = vector.shape_cast %28 : vector<8x8xf32> to vector<1x8x8xf32>
    tpu.vector_store %arg4[%c0_30, %c0_31, %c0_32], %31 {strides = array<i32>} : memref<4x8x8xf32, #tpu.memory_space<vmem>>, vector<1x8x8xf32>,
    %c1_33 = arith.constant 1 : index
    %c0_34 = arith.constant 0 : index
    %c0_35 = arith.constant 0 : index
    %32 = vector.load %arg3[%c1_33, %c0_34, %c0_35] : memref<4x19x19xf32, #tpu.memory_space<vmem>>, vector<1x19x19xf32>
    %33 = vector.shape_cast %32 : vector<1x19x19xf32> to vector<19x19xf32>
    %cst_36 = arith.constant dense<0.000000e+00> : vector<19x8xf32>
    %34 = tpu.matmul %33, %9, %cst_36 {dimension_numbers = #tpu.dot_dimension_numbers<[1], [0], [0], [1], [0, 0, 1, 1], [], []>} : vector<19x19xf32>, vector<19x8xf32>, vector<19x8xf32> -> vector<19x8xf32>
    %cst_37 = arith.constant dense<0.000000e+00> : vector<8x8xf32>
    %35 = tpu.matmul %1, %34, %cst_37 {dimension_numbers = #tpu.dot_dimension_numbers<[1], [0], [0], [1], [0, 0, 1, 1], [], []>} : vector<8x19xf32>, vector<19x8xf32>, vector<8x8xf32> -> vector<8x8xf32>
    %cst_38 = arith.constant dense<0.000000e+00> : vector<19x8xf32>
    %36 = tpu.matmul %33, %11, %cst_38 {dimension_numbers = #tpu.dot_dimension_numbers<[1], [0], [0], [1], [0, 0, 1, 1], [], []>} : vector<19x19xf32>, vector<19x8xf32>, vector<19x8xf32> -> vector<19x8xf32>
    %cst_39 = arith.constant dense<0.000000e+00> : vector<8x8xf32>
    %37 = tpu.matmul %3, %36, %cst_39 {dimension_numbers = #tpu.dot_dimension_numbers<[1], [0], [0], [1], [0, 0, 1, 1], [], []>} : vector<8x19xf32>, vector<19x8xf32>, vector<8x8xf32> -> vector<8x8xf32>
    %38 = arith.addf %35, %37 : vector<8x8xf32>
    %cst_40 = arith.constant dense<0.000000e+00> : vector<19x8xf32>
    %39 = tpu.matmul %33, %13, %cst_40 {dimension_numbers = #tpu.dot_dimension_numbers<[1], [0], [0], [1], [0, 0, 1, 1], [], []>} : vector<19x19xf32>, vector<19x8xf32>, vector<19x8xf32> -> vector<19x8xf32>
    %cst_41 = arith.constant dense<0.000000e+00> : vector<8x8xf32>
    %40 = tpu.matmul %5, %39, %cst_41 {dimension_numbers = #tpu.dot_dimension_numbers<[1], [0], [0], [1], [0, 0, 1, 1], [], []>} : vector<8x19xf32>, vector<19x8xf32>, vector<8x8xf32> -> vector<8x8xf32>
    %41 = arith.addf %38, %40 : vector<8x8xf32>
    %cst_42 = arith.constant dense<0.000000e+00> : vector<19x8xf32>
    %42 = tpu.matmul %33, %15, %cst_42 {dimension_numbers = #tpu.dot_dimension_numbers<[1], [0], [0], [1], [0, 0, 1, 1], [], []>} : vector<19x19xf32>, vector<19x8xf32>, vector<19x8xf32> -> vector<19x8xf32>
    %cst_43 = arith.constant dense<0.000000e+00> : vector<8x8xf32>
    %43 = tpu.matmul %7, %42, %cst_43 {dimension_numbers = #tpu.dot_dimension_numbers<[1], [0], [0], [1], [0, 0, 1, 1], [], []>} : vector<8x19xf32>, vector<19x8xf32>, vector<8x8xf32> -> vector<8x8xf32>
    %44 = arith.addf %41, %43 : vector<8x8xf32>
    %c1_44 = arith.constant 1 : index
    %c0_45 = arith.constant 0 : index
    %c0_46 = arith.constant 0 : index
    %45 = vector.load %arg4[%c1_44, %c0_45, %c0_46] : memref<4x8x8xf32, #tpu.memory_space<vmem>>, vector<1x8x8xf32>
    %46 = vector.shape_cast %45 : vector<1x8x8xf32> to vector<8x8xf32>
    %47 = vector.shape_cast %44 : vector<8x8xf32> to vector<1x8x8xf32>
    tpu.vector_store %arg4[%c1_44, %c0_45, %c0_46], %47 {strides = array<i32>} : memref<4x8x8xf32, #tpu.memory_space<vmem>>, vector<1x8x8xf32>,
    %c2_47 = arith.constant 2 : index
    %c0_48 = arith.constant 0 : index
    %c0_49 = arith.constant 0 : index
    %48 = vector.load %arg3[%c2_47, %c0_48, %c0_49] : memref<4x19x19xf32, #tpu.memory_space<vmem>>, vector<1x19x19xf32>
    %49 = vector.shape_cast %48 : vector<1x19x19xf32> to vector<19x19xf32>
    %cst_50 = arith.constant dense<0.000000e+00> : vector<19x8xf32>
    %50 = tpu.matmul %49, %9, %cst_50 {dimension_numbers = #tpu.dot_dimension_numbers<[1], [0], [0], [1], [0, 0, 1, 1], [], []>} : vector<19x19xf32>, vector<19x8xf32>, vector<19x8xf32> -> vector<19x8xf32>
    %cst_51 = arith.constant dense<0.000000e+00> : vector<8x8xf32>
    %51 = tpu.matmul %1, %50, %cst_51 {dimension_numbers = #tpu.dot_dimension_numbers<[1], [0], [0], [1], [0, 0, 1, 1], [], []>} : vector<8x19xf32>, vector<19x8xf32>, vector<8x8xf32> -> vector<8x8xf32>
    %cst_52 = arith.constant dense<0.000000e+00> : vector<19x8xf32>
    %52 = tpu.matmul %49, %11, %cst_52 {dimension_numbers = #tpu.dot_dimension_numbers<[1], [0], [0], [1], [0, 0, 1, 1], [], []>} : vector<19x19xf32>, vector<19x8xf32>, vector<19x8xf32> -> vector<19x8xf32>
    %cst_53 = arith.constant dense<0.000000e+00> : vector<8x8xf32>
    %53 = tpu.matmul %3, %52, %cst_53 {dimension_numbers = #tpu.dot_dimension_numbers<[1], [0], [0], [1], [0, 0, 1, 1], [], []>} : vector<8x19xf32>, vector<19x8xf32>, vector<8x8xf32> -> vector<8x8xf32>
    %54 = arith.addf %51, %53 : vector<8x8xf32>
    %cst_54 = arith.constant dense<0.000000e+00> : vector<19x8xf32>
    %55 = tpu.matmul %49, %13, %cst_54 {dimension_numbers = #tpu.dot_dimension_numbers<[1], [0], [0], [1], [0, 0, 1, 1], [], []>} : vector<19x19xf32>, vector<19x8xf32>, vector<19x8xf32> -> vector<19x8xf32>
    %cst_55 = arith.constant dense<0.000000e+00> : vector<8x8xf32>
    %56 = tpu.matmul %5, %55, %cst_55 {dimension_numbers = #tpu.dot_dimension_numbers<[1], [0], [0], [1], [0, 0, 1, 1], [], []>} : vector<8x19xf32>, vector<19x8xf32>, vector<8x8xf32> -> vector<8x8xf32>
    %57 = arith.addf %54, %56 : vector<8x8xf32>
    %cst_56 = arith.constant dense<0.000000e+00> : vector<19x8xf32>
    %58 = tpu.matmul %49, %15, %cst_56 {dimension_numbers = #tpu.dot_dimension_numbers<[1], [0], [0], [1], [0, 0, 1, 1], [], []>} : vector<19x19xf32>, vector<19x8xf32>, vector<19x8xf32> -> vector<19x8xf32>
    %cst_57 = arith.constant dense<0.000000e+00> : vector<8x8xf32>
    %59 = tpu.matmul %7, %58, %cst_57 {dimension_numbers = #tpu.dot_dimension_numbers<[1], [0], [0], [1], [0, 0, 1, 1], [], []>} : vector<8x19xf32>, vector<19x8xf32>, vector<8x8xf32> -> vector<8x8xf32>
    %60 = arith.addf %57, %59 : vector<8x8xf32>
    %c2_58 = arith.constant 2 : index
    %c0_59 = arith.constant 0 : index
    %c0_60 = arith.constant 0 : index
    %61 = vector.load %arg4[%c2_58, %c0_59, %c0_60] : memref<4x8x8xf32, #tpu.memory_space<vmem>>, vector<1x8x8xf32>
    %62 = vector.shape_cast %61 : vector<1x8x8xf32> to vector<8x8xf32>
    %63 = vector.shape_cast %60 : vector<8x8xf32> to vector<1x8x8xf32>
    tpu.vector_store %arg4[%c2_58, %c0_59, %c0_60], %63 {strides = array<i32>} : memref<4x8x8xf32, #tpu.memory_space<vmem>>, vector<1x8x8xf32>,
    %c3_61 = arith.constant 3 : index
    %c0_62 = arith.constant 0 : index
    %c0_63 = arith.constant 0 : index
    %64 = vector.load %arg3[%c3_61, %c0_62, %c0_63] : memref<4x19x19xf32, #tpu.memory_space<vmem>>, vector<1x19x19xf32>
    %65 = vector.shape_cast %64 : vector<1x19x19xf32> to vector<19x19xf32>
    %cst_64 = arith.constant dense<0.000000e+00> : vector<19x8xf32>
    %66 = tpu.matmul %65, %9, %cst_64 {dimension_numbers = #tpu.dot_dimension_numbers<[1], [0], [0], [1], [0, 0, 1, 1], [], []>} : vector<19x19xf32>, vector<19x8xf32>, vector<19x8xf32> -> vector<19x8xf32>
    %cst_65 = arith.constant dense<0.000000e+00> : vector<8x8xf32>
    %67 = tpu.matmul %1, %66, %cst_65 {dimension_numbers = #tpu.dot_dimension_numbers<[1], [0], [0], [1], [0, 0, 1, 1], [], []>} : vector<8x19xf32>, vector<19x8xf32>, vector<8x8xf32> -> vector<8x8xf32>
    %cst_66 = arith.constant dense<0.000000e+00> : vector<19x8xf32>
    %68 = tpu.matmul %65, %11, %cst_66 {dimension_numbers = #tpu.dot_dimension_numbers<[1], [0], [0], [1], [0, 0, 1, 1], [], []>} : vector<19x19xf32>, vector<19x8xf32>, vector<19x8xf32> -> vector<19x8xf32>
    %cst_67 = arith.constant dense<0.000000e+00> : vector<8x8xf32>
    %69 = tpu.matmul %3, %68, %cst_67 {dimension_numbers = #tpu.dot_dimension_numbers<[1], [0], [0], [1], [0, 0, 1, 1], [], []>} : vector<8x19xf32>, vector<19x8xf32>, vector<8x8xf32> -> vector<8x8xf32>
    %70 = arith.addf %67, %69 : vector<8x8xf32>
    %cst_68 = arith.constant dense<0.000000e+00> : vector<19x8xf32>
    %71 = tpu.matmul %65, %13, %cst_68 {dimension_numbers = #tpu.dot_dimension_numbers<[1], [0], [0], [1], [0, 0, 1, 1], [], []>} : vector<19x19xf32>, vector<19x8xf32>, vector<19x8xf32> -> vector<19x8xf32>
    %cst_69 = arith.constant dense<0.000000e+00> : vector<8x8xf32>
    %72 = tpu.matmul %5, %71, %cst_69 {dimension_numbers = #tpu.dot_dimension_numbers<[1], [0], [0], [1], [0, 0, 1, 1], [], []>} : vector<8x19xf32>, vector<19x8xf32>, vector<8x8xf32> -> vector<8x8xf32>
    %73 = arith.addf %70, %72 : vector<8x8xf32>
    %cst_70 = arith.constant dense<0.000000e+00> : vector<19x8xf32>
    %74 = tpu.matmul %65, %15, %cst_70 {dimension_numbers = #tpu.dot_dimension_numbers<[1], [0], [0], [1], [0, 0, 1, 1], [], []>} : vector<19x19xf32>, vector<19x8xf32>, vector<19x8xf32> -> vector<19x8xf32>
    %cst_71 = arith.constant dense<0.000000e+00> : vector<8x8xf32>
    %75 = tpu.matmul %7, %74, %cst_71 {dimension_numbers = #tpu.dot_dimension_numbers<[1], [0], [0], [1], [0, 0, 1, 1], [], []>} : vector<8x19xf32>, vector<19x8xf32>, vector<8x8xf32> -> vector<8x8xf32>
    %76 = arith.addf %73, %75 : vector<8x8xf32>
    %c3_72 = arith.constant 3 : index
    %c0_73 = arith.constant 0 : index
    %c0_74 = arith.constant 0 : index
    %77 = vector.load %arg4[%c3_72, %c0_73, %c0_74] : memref<4x8x8xf32, #tpu.memory_space<vmem>>, vector<1x8x8xf32>
    %78 = vector.shape_cast %77 : vector<1x8x8xf32> to vector<8x8xf32>
    %79 = vector.shape_cast %76 : vector<8x8xf32> to vector<1x8x8xf32>
    tpu.vector_store %arg4[%c3_72, %c0_73, %c0_74], %79 {strides = array<i32>} : memref<4x8x8xf32, #tpu.memory_space<vmem>>, vector<1x8x8xf32>,
    return
  }
  func.func @transform_0(%arg0: i32) -> (i32, i32, i32) {
    %c0_i32 = arith.constant 0 : i32
    %c0_i32_0 = arith.constant 0 : i32
    %c0_i32_1 = arith.constant 0 : i32
    %c0_i32_2 = arith.constant 0 : i32
    return %c0_i32, %c0_i32_0, %c0_i32_1 : i32, i32, i32
  }
  func.func @transform_1(%arg0: i32) -> (i32, i32, i32) {
    %c0_i32 = arith.constant 0 : i32
    %c0_i32_0 = arith.constant 0 : i32
    %c0_i32_1 = arith.constant 0 : i32
    %c0_i32_2 = arith.constant 0 : i32
    return %c0_i32, %c0_i32_0, %c0_i32_1 : i32, i32, i32
  }
  func.func @transform_2(%arg0: i32) -> (i32, i32, i32) {
    %c0_i32 = arith.constant 0 : i32
    %c0_i32_0 = arith.constant 0 : i32
    %c0_i32_1 = arith.constant 0 : i32
    return %arg0, %c0_i32, %c0_i32_0 : i32, i32, i32
  }
  func.func @transform_3(%arg0: i32) -> (i32, i32, i32) {
    %c0_i32 = arith.constant 0 : i32
    %c0_i32_0 = arith.constant 0 : i32
    %c0_i32_1 = arith.constant 0 : i32
    return %arg0, %c0_i32, %c0_i32_0 : i32, i32, i32
  }
}

</mosaic_0001>

<llo_original>
// kernel: tpu_custom_call.1
$region0: #{tpu_custom_call.1}
  #allocation0 [shape = 'u32[]', space=smem, size = 0x4, offset = 0x4, fixed_abs, tag = 'smem constant byte address 0x4 - core index']
  #allocation1 [shape = 'u32[144,128]{1,0:T(1,128)}', space=vmem, size = 0x12000, scoped, tag = 'internal scratch']
  %s0 = inlined_call_operand.vmem [shape: f32[4,8,19], index: 0, kind: input, shape index: {}]
  %s1 = inlined_call_operand.vmem [shape: f32[4,19,8], index: 1, kind: input, shape index: {}]
  %s2 = inlined_call_operand.vmem [shape: f32[8,19,19], index: 2, kind: input, shape index: {}]
  %s3 = inlined_call_operand.hbm [shape: f32[8,8,8], index: 3, kind: output, shape index: {}]
  %s4 = sld [smem:[#allocation0]]
  $region45: #{tpu_custom_call.1} parent=0
    _
  %s6 = ssub.s32 1, %s4
  %s7 = scalar_select 0, %s6, %s4
  $region1: #{tpu_custom_call.1} parent=0
    #allocation2 [shape = 'u8[32768]{0}', space=vmem, size = 0x8000, scoped, tag = 'output window, operand 0']
    #allocation3 [shape = 's32[2]{0}', space=sflag, size = 0x8, scoped, tag = 'scoped memory for tpu_custom_call.1']
    %8 = vsyncpa [#allocation3], 0
    %s9 = scalar_lea.sflag [#allocation3], 1
    %10 = vsyncpa %s9, 0
    loop: start=0, step=1, limit=4
    $region2: #{tpu_custom_call.1} parent=1 // loop_pre_header
      _
    $region3: #{tpu_custom_call.1} parent=1 // loop_header
      %s12 = sphi 0, %s16
      %p13 = scmp.ge.s32.totalorder %s12, 4
      %s20 = sphi 0, %s20
      %s22 = sphi 0, %s20
      %s23 = sphi 0, %s22
      %s37 = sphi 0, %s23
      %s41 = sphi 0, %s41
      %s43 = sphi 0, %s41
      %s44 = sphi 0, %s43
      %s58 = sphi 0, %s44
      %s64 = sphi 0, %s66
      %s67 = sphi 0, %s64
      %s68 = sphi 0, %s67
      %s84 = sphi 0, %s68
      %s90 = sphi 0, %s92
      %s93 = sphi 0, %s90
      %s94 = sphi 0, %s93
      %s110 = sphi 0, %s94
    $region4: #{tpu_custom_call.1} parent=1 // loop_header_branch
      %15 = sbr.rel (%p13) target = $region8
    $region5: #{tpu_custom_call.1} parent=1 // loop_body
      %s17 = ssub.s32 %s12, 1
      %s18 = ssub.s32 %s12, 2
      %s19 = sadd.s32 %s12, 1
      %s21 = sadd.s32 %s20, 1
      %p24 = scmp.eq.s32.totalorder %s12, 1
      %p25 = scmp.ne.s32.totalorder %s20, %s22
      %p26 = scmp.eq.s32.totalorder %s12, 0
      %p27 = por %p25, %p26
      %p28 = scmp.ne.s32.totalorder %s20, %s22
      %p29 = scmp.eq.s32.totalorder %s17, 1
      %p30 = por %p28, %p29
      %p31 = scmp.ne.s32.totalorder %s22, %s23
      %p32 = scmp.eq.s32.totalorder %s17, 0
      %p33 = por %p31, %p32
      %p34 = scmp.ne.s32.totalorder %s22, %s23
      %p35 = scmp.eq.s32.totalorder %s18, 1
      %p36 = por %p34, %p35
      %p38 = scmp.ne.s32.totalorder %s23, %s37
      %p39 = scmp.eq.s32.totalorder %s18, 0
      %p40 = por %p38, %p39
      %s42 = sadd.s32 %s41, 1
      %p45 = scmp.eq.s32.totalorder %s12, 1
      %p46 = scmp.ne.s32.totalorder %s41, %s43
      %p47 = scmp.eq.s32.totalorder %s12, 0
      %p48 = por %p46, %p47
      %p49 = scmp.ne.s32.totalorder %s41, %s43
      %p50 = scmp.eq.s32.totalorder %s17, 1
      %p51 = por %p49, %p50
      %p52 = scmp.ne.s32.totalorder %s43, %s44
      %p53 = scmp.eq.s32.totalorder %s17, 0
      %p54 = por %p52, %p53
      %p55 = scmp.ne.s32.totalorder %s43, %s44
      %p56 = scmp.eq.s32.totalorder %s18, 1
      %p57 = por %p55, %p56
      %p59 = scmp.ne.s32.totalorder %s44, %s58
      %p60 = scmp.eq.s32.totalorder %s18, 0
      %p61 = por %p59, %p60
      %s62 = ssub.s32 %s12, %s19
      %p63 = scmp.eq.s32.totalorder %s62, 0
      %s65 = sadd.s32 %s64, 1
      %s66 = scalar_select %p63, %s64, %s65
      %p69 = pneg %p63
      %p70 = scmp.eq.s32.totalorder %s12, 1
      %p71 = por %p69, %p70
      %p72 = scmp.ne.s32.totalorder %s64, %s67
      %p73 = scmp.eq.s32.totalorder %s12, 0
      %p74 = por %p72, %p73
      %p75 = scmp.ne.s32.totalorder %s64, %s67
      %p76 = scmp.eq.s32.totalorder %s17, 1
      %p77 = por %p75, %p76
      %p78 = scmp.ne.s32.totalorder %s67, %s68
      %p79 = scmp.eq.s32.totalorder %s17, 0
      %p80 = por %p78, %p79
      %p81 = scmp.ne.s32.totalorder %s67, %s68
      %p82 = scmp.eq.s32.totalorder %s18, 1
      %p83 = por %p81, %p82
      %p85 = scmp.ne.s32.totalorder %s68, %s84
      %p86 = scmp.eq.s32.totalorder %s18, 0
      %p87 = por %p85, %p86
      %s88 = ssub.s32 %s12, %s19
      %p89 = scmp.eq.s32.totalorder %s88, 0
      %s91 = sadd.s32 %s90, 1
      %s92 = scalar_select %p89, %s90, %s91
      %p95 = pneg %p89
      %p96 = scmp.eq.s32.totalorder %s12, 1
      %p97 = por %p95, %p96
      %p98 = scmp.ne.s32.totalorder %s90, %s93
      %p99 = scmp.eq.s32.totalorder %s12, 0
      %p100 = por %p98, %p99
      %p101 = scmp.ne.s32.totalorder %s90, %s93
      %p102 = scmp.eq.s32.totalorder %s17, 1
      %p103 = por %p101, %p102
      %p104 = scmp.ne.s32.totalorder %s93, %s94
      %p105 = scmp.eq.s32.totalorder %s17, 0
      %p106 = por %p104, %p105
      %p107 = scmp.ne.s32.totalorder %s93, %s94
      %p108 = scmp.eq.s32.totalorder %s18, 1
      %p109 = por %p107, %p108
      %p111 = scmp.ne.s32.totalorder %s94, %s110
      %p112 = scmp.eq.s32.totalorder %s18, 0
      %p113 = por %p111, %p112
      %p114 = scmp.le.s32.totalorder 1, %s12
      %p115 = scmp.lt.s32.totalorder %s12, 3
      %p116 = pnand %p114, %p115
      %p117 = pneg %p116
      // Predicated region
      $region9: #{tpu_custom_call.1} parent=5 // pred_check
        _
      $region10: #{tpu_custom_call.1} parent=5 // pred_check_branch
        %119 = sbr.rel (%p116) target = $region12
      $region11: #{tpu_custom_call.1} parent=5 // pred_region
        %s120 = ssub.s32 %s12, 1
        // Predicated region
        $region13: #{tpu_custom_call.1} parent=11 // pred_check
          %p121 = pneg %p33
        $region14: #{tpu_custom_call.1} parent=11 // pred_check_branch
          %123 = sbr.rel (%p121) target = $region16
        $region15: #{tpu_custom_call.1} parent=11 // pred_region
          _
        $region16: #{tpu_custom_call.1} parent=11 // pred_fallthru
          _
        // Predicated region
        $region17: #{tpu_custom_call.1} parent=11 // pred_check
          %p124 = pneg %p54
        $region18: #{tpu_custom_call.1} parent=11 // pred_check_branch
          %126 = sbr.rel (%p124) target = $region20
        $region19: #{tpu_custom_call.1} parent=11 // pred_region
          _
        $region20: #{tpu_custom_call.1} parent=11 // pred_fallthru
          _
      $region12: #{tpu_custom_call.1} parent=5 // pred_fallthru
        _
      %p127 = scmp.lt.s32.totalorder %s12, 2
      // Predicated region
      $region21: #{tpu_custom_call.1} parent=5 // pred_check
        %p128 = pneg %p127
      $region22: #{tpu_custom_call.1} parent=5 // pred_check_branch
        %130 = sbr.rel (%p128) target = $region24
      $region23: #{tpu_custom_call.1} parent=5 // pred_region
        // Predicated region
        $region25: #{tpu_custom_call.1} parent=23 // pred_check
          %p131 = pneg %p74
        $region26: #{tpu_custom_call.1} parent=23 // pred_check_branch
          %133 = sbr.rel (%p131) target = $region28
        $region27: #{tpu_custom_call.1} parent=23 // pred_region
          %s134 = smul.u32 4, %s12
          %p135 = scmp.lt.s32.totalorder %s134, 7
          %s136 = scalar_select %p135, %s134, 7
          %s137 = smul.addr %s136, 3
          %s138 = smul.addr %s137, 8
          %s139 = scalar_lea.vmem %s2, %s138
          %s140 = smul.u32 4, %s12
        $region28: #{tpu_custom_call.1} parent=23 // pred_fallthru
          _
      $region24: #{tpu_custom_call.1} parent=5 // pred_fallthru
        _
      %p141 = scmp.le.s32.totalorder 1, %s12
      %p142 = scmp.lt.s32.totalorder %s12, 3
      %p143 = pnand %p141, %p142
      %p144 = pneg %p143
      // Predicated region
      $region29: #{tpu_custom_call.1} parent=5 // pred_check
        _
      $region30: #{tpu_custom_call.1} parent=5 // pred_check_branch
        %146 = sbr.rel (%p143) target = $region32
      $region31: #{tpu_custom_call.1} parent=5 // pred_region
        %s147 = ssub.s32 %s12, 1
        %p148 = pneg %p33
        %p149 = pneg %p30
        %p150 = pneg %p54
        %p151 = pneg %p51
        %s152 = smul.u32 4, %s17
        %p153 = scmp.lt.s32.totalorder %s152, 7
        %s154 = scalar_select %p153, %s152, 7
        %s155 = smul.addr %s154, 3
        %s156 = smul.addr %s155, 8
        %s157 = scalar_lea.vmem %s2, %s156
        %p158 = pneg %p80
        %p159 = pneg %p77
        %p160 = pneg %p106
        %p161 = pneg %p103
        %s162 = sand.u32 %s93, 1
        %s163 = scalar_lea.sflag [#allocation3], %s162
        %s164 = sand.u32 %s93, 1
        %s165 = smul.addr %s164, 32
        %s166 = scalar_lea.vmem [#allocation2], %s165
        %s167 = smul.u32 4, %s17
        %p168 = scmp.lt.s32.totalorder %s167, 7
        %s169 = scalar_select %p168, %s167, 7
        %s170 = smul.addr %s169, 3
        %s171 = smul.addr %s170, 8
        %s172 = scalar_lea.vmem %s2, %s171
        %s173 = smul.u32 4, %s17
        %s174 = smul.u32 4, %s17
        %v175 = vld [vmem:[%s0] sm:$0xff]
        %s176 = scalar_lea.vmem %s0, 8
        %v177 = vld [vmem:[%s176] sm:$0xff]
        %s178 = scalar_lea.vmem %s0, 16
        %v179 = vld [vmem:[%s178] sm:$0xff]
        %s180 = scalar_lea.vmem %s0, 24
        %v181 = vld [vmem:[%s180] sm:$0xff]
        %v182 = vld [vmem:[%s1] sm:$0xff]
        %v183 = vld [vmem:[%s1 + $0x8] sm:$0xff]
        %v184 = vld [vmem:[%s1 + $0x10] sm:$0x7]
        %s185 = scalar_lea.vmem %s1, 24
        %v186 = vld [vmem:[%s185] sm:$0xff]
        %v187 = vld [vmem:[%s185 + $0x8] sm:$0xff]
        %v188 = vld [vmem:[%s185 + $0x10] sm:$0x7]
        %s189 = scalar_lea.vmem %s1, 48
        %v190 = vld [vmem:[%s189] sm:$0xff]
        %v191 = vld [vmem:[%s189 + $0x8] sm:$0xff]
        %v192 = vld [vmem:[%s189 + $0x10] sm:$0x7]
        %s193 = scalar_lea.vmem %s1, 72
        %v194 = vld [vmem:[%s193] sm:$0xff]
        %v195 = vld [vmem:[%s193 + $0x8] sm:$0xff]
        %v196 = vld [vmem:[%s193 + $0x10] sm:$0x7]
        %v197 = vld [vmem:[%s172] sm:$0xff]
        %v198 = vld [vmem:[%s172 + $0x8] sm:$0xff]
        %v199 = vld [vmem:[%s172 + $0x10] sm:$0x7]
        %vm200 = vcmask 154624
        %v202 = vsel %vm200, %v197, 0
        %v205 = vsel %vm200, %v198, 0
        %v208 = vsel %vm200, %v199, 0
        %vm210 = vcmask 1042432
        %v212 = vsel %vm210, %v184, 0
        %214 = vmatprep.subr.mxu0 0.0
        %215 = vmatpush1.msra.mxu0 0.0
        %216 = vmatprep.subr.mxu0 0.0
        %217 = vmatpush1.msra.mxu0 0.0
        %218 = vmatprep.subr.mxu0 0.0
        %219 = vmatpush1.msra.mxu0 0.0
        %220 = vmatprep.subr.mxu0 0.0
        %221 = vmatpush1.msra.mxu0 0.0
        %222 = vmatprep.subr.mxu0 0.0
        %223 = vmatpush1.msra.mxu0 0.0
        %224 = vmatprep.subr.mxu0 0.0
        %225 = vmatpush1.msra.mxu0 0.0
        %226 = vmatprep.subr.mxu0 0.0
        %227 = vmatpush1.msra.mxu0 0.0
        %228 = vmatprep.subr.mxu0 0.0
        %229 = vmatpush1.msra.mxu0 0.0
        %230 = vmatprep.subr.mxu0 0.0
        %231 = vmatpush1.msra.mxu0 0.0
        %232 = vmatprep.subr.mxu0 0.0
        %233 = vmatpush1.msra.mxu0 0.0
        %234 = vmatprep.subr.mxu0 0.0
        %235 = vmatpush1.msra.mxu0 0.0
        %236 = vmatprep.subr.mxu0 0.0
        %237 = vmatpush1.msra.mxu0 0.0
        %238 = vmatprep.subr.mxu0 0.0
        %239 = vmatpush1.msra.mxu0 0.0
        %240 = vmatprep.subr.mxu0 0.0
        %241 = vmatpush1.msra.mxu0 %v212
        %242 = vmatprep.subr.mxu0 0.0
        %243 = vmatpush1.msra.mxu0 %v183
        %244 = vmatprep.subr.mxu0 0.0
        %245 = vmatpush1.msra.mxu0 %v182
        %246 = vmatprep.subr.mxu0 0.0
        %247 = vmatpush2.msra.mxu0 0.0
        %248 = vmatprep.subr.mxu0 0.0
        %249 = vmatpush2.msra.mxu0 0.0
        %250 = vmatprep.subr.mxu0 0.0
        %251 = vmatpush2.msra.mxu0 0.0
        %252 = vmatprep.subr.mxu0 0.0
        %253 = vmatpush2.msra.mxu0 0.0
        %254 = vmatprep.subr.mxu0 0.0
        %255 = vmatpush2.msra.mxu0 0.0
        %256 = vmatprep.subr.mxu0 0.0
        %257 = vmatpush2.msra.mxu0 0.0
        %258 = vmatprep.subr.mxu0 0.0
        %259 = vmatpush2.msra.mxu0 0.0
        %260 = vmatprep.subr.mxu0 0.0
        %261 = vmatpush2.msra.mxu0 0.0
        %262 = vmatprep.subr.mxu0 0.0
        %263 = vmatpush2.msra.mxu0 0.0
        %264 = vmatprep.subr.mxu0 0.0
        %265 = vmatpush2.msra.mxu0 0.0
        %266 = vmatprep.subr.mxu0 0.0
        %267 = vmatpush2.msra.mxu0 0.0
        %268 = vmatprep.subr.mxu0 0.0
        %269 = vmatpush2.msra.mxu0 0.0
        %270 = vmatprep.subr.mxu0 0.0
        %271 = vmatpush2.msra.mxu0 0.0
        %272 = vmatprep.subr.mxu0 0.0
        %273 = vmatpush2.msra.mxu0 0.0
        %274 = vmatprep.subr.mxu0 0.0
        %275 = vmatpush2.msra.mxu0 0.0
        %276 = vmatprep.subr.mxu0 0.0
        %277 = vmatpush2.msra.mxu0 0.0
        %278 = vmatprep.mubr.f32.mxu0 0.0
        %279 = vmatmul.mubr.f32.gmra.mxu0 %v202
        %v280 = vpop.f32.mrf.mxu0
        %v281 = vadd.f32 0.0, %v280
        %v282 = vpop.f32.mrf.mxu0
        %283 = vmatprep.mubr.f32.mxu0 0.0
        %284 = vmatmul.mubr.f32.gmra.mxu0 %v205
        %v285 = vpop.f32.mrf.mxu0
        %v286 = vadd.f32 0.0, %v285
        %v287 = vpop.f32.mrf.mxu0
        %288 = vmatprep.mubr.f32.mxu0 0.0
        %289 = vmatmul.mubr.f32.gmra.mxu0 %v208
        %v290 = vpop.f32.mrf.mxu0
        %v291 = vadd.f32 0.0, %v290
        %v292 = vpop.f32.mrf.mxu0
        %293 = vdwg.mxu0
        %v295 = vsel %vm210, %v188, 0
        %297 = vmatprep.subr.mxu0 0.0
        %298 = vmatpush1.msra.mxu0 0.0
        %299 = vmatprep.subr.mxu0 0.0
        %300 = vmatpush1.msra.mxu0 0.0
        %301 = vmatprep.subr.mxu0 0.0
        %302 = vmatpush1.msra.mxu0 0.0
        %303 = vmatprep.subr.mxu0 0.0
        %304 = vmatpush1.msra.mxu0 0.0
        %305 = vmatprep.subr.mxu0 0.0
        %306 = vmatpush1.msra.mxu0 0.0
        %307 = vmatprep.subr.mxu0 0.0
        %308 = vmatpush1.msra.mxu0 0.0
        %309 = vmatprep.subr.mxu0 0.0
        %310 = vmatpush1.msra.mxu0 0.0
        %311 = vmatprep.subr.mxu0 0.0
        %312 = vmatpush1.msra.mxu0 0.0
        %313 = vmatprep.subr.mxu0 0.0
        %314 = vmatpush1.msra.mxu0 0.0
        %315 = vmatprep.subr.mxu0 0.0
        %316 = vmatpush1.msra.mxu0 0.0
        %317 = vmatprep.subr.mxu0 0.0
        %318 = vmatpush1.msra.mxu0 0.0
        %319 = vmatprep.subr.mxu0 0.0
        %320 = vmatpush1.msra.mxu0 0.0
        %321 = vmatprep.subr.mxu0 0.0
        %322 = vmatpush1.msra.mxu0 0.0
        %323 = vmatprep.subr.mxu0 0.0
        %324 = vmatpush1.msra.mxu0 %v295
        %325 = vmatprep.subr.mxu0 0.0
        %326 = vmatpush1.msra.mxu0 %v187
        %327 = vmatprep.subr.mxu0 0.0
        %328 = vmatpush1.msra.mxu0 %v186
        %329 = vmatprep.subr.mxu0 0.0
        %330 = vmatpush2.msra.mxu0 0.0
        %331 = vmatprep.subr.mxu0 0.0
        %332 = vmatpush2.msra.mxu0 0.0
        %333 = vmatprep.subr.mxu0 0.0
        %334 = vmatpush2.msra.mxu0 0.0
        %335 = vmatprep.subr.mxu0 0.0
        %336 = vmatpush2.msra.mxu0 0.0
        %337 = vmatprep.subr.mxu0 0.0
        %338 = vmatpush2.msra.mxu0 0.0
        %339 = vmatprep.subr.mxu0 0.0
        %340 = vmatpush2.msra.mxu0 0.0
        %341 = vmatprep.subr.mxu0 0.0
        %342 = vmatpush2.msra.mxu0 0.0
        %343 = vmatprep.subr.mxu0 0.0
        %344 = vmatpush2.msra.mxu0 0.0
        %345 = vmatprep.subr.mxu0 0.0
        %346 = vmatpush2.msra.mxu0 0.0
        %347 = vmatprep.subr.mxu0 0.0
        %348 = vmatpush2.msra.mxu0 0.0
        %349 = vmatprep.subr.mxu0 0.0
        %350 = vmatpush2.msra.mxu0 0.0
        %351 = vmatprep.subr.mxu0 0.0
        %352 = vmatpush2.msra.mxu0 0.0
        %353 = vmatprep.subr.mxu0 0.0
        %354 = vmatpush2.msra.mxu0 0.0
        %355 = vmatprep.subr.mxu0 0.0
        %356 = vmatpush2.msra.mxu0 0.0
        %357 = vmatprep.subr.mxu0 0.0
        %358 = vmatpush2.msra.mxu0 0.0
        %359 = vmatprep.subr.mxu0 0.0
        %360 = vmatpush2.msra.mxu0 0.0
        %361 = vmatprep.mubr.f32.mxu0 0.0
        %362 = vmatmul.mubr.f32.gmra.mxu0 %v202
        %v363 = vpop.f32.mrf.mxu0
        %v364 = vadd.f32 0.0, %v363
        %v365 = vpop.f32.mrf.mxu0
        %366 = vmatprep.mubr.f32.mxu0 0.0
        %367 = vmatmul.mubr.f32.gmra.mxu0 %v205
        %v368 = vpop.f32.mrf.mxu0
        %v369 = vadd.f32 0.0, %v368
        %v370 = vpop.f32.mrf.mxu0
        %371 = vmatprep.mubr.f32.mxu0 0.0
        %372 = vmatmul.mubr.f32.gmra.mxu0 %v208
        %v373 = vpop.f32.mrf.mxu0
        %v374 = vadd.f32 0.0, %v373
        %v375 = vpop.f32.mrf.mxu0
        %376 = vdwg.mxu0
        %v378 = vsel %vm200, %v177, 0
        %v381 = vsel %vm210, %v374, 0
        %383 = vmatprep.subr.mxu0 0.0
        %384 = vmatpush1.msra.mxu0 0.0
        %385 = vmatprep.subr.mxu0 0.0
        %386 = vmatpush1.msra.mxu0 0.0
        %387 = vmatprep.subr.mxu0 0.0
        %388 = vmatpush1.msra.mxu0 0.0
        %389 = vmatprep.subr.mxu0 0.0
        %390 = vmatpush1.msra.mxu0 0.0
        %391 = vmatprep.subr.mxu0 0.0
        %392 = vmatpush1.msra.mxu0 0.0
        %393 = vmatprep.subr.mxu0 0.0
        %394 = vmatpush1.msra.mxu0 0.0
        %395 = vmatprep.subr.mxu0 0.0
        %396 = vmatpush1.msra.mxu0 0.0
        %397 = vmatprep.subr.mxu0 0.0
        %398 = vmatpush1.msra.mxu0 0.0
        %399 = vmatprep.subr.mxu0 0.0
        %400 = vmatpush1.msra.mxu0 0.0
        %401 = vmatprep.subr.mxu0 0.0
        %402 = vmatpush1.msra.mxu0 0.0
        %403 = vmatprep.subr.mxu0 0.0
        %404 = vmatpush1.msra.mxu0 0.0
        %405 = vmatprep.subr.mxu0 0.0
        %406 = vmatpush1.msra.mxu0 0.0
        %407 = vmatprep.subr.mxu0 0.0
        %408 = vmatpush1.msra.mxu0 0.0
        %409 = vmatprep.subr.mxu0 0.0
        %410 = vmatpush1.msra.mxu0 %v381
        %411 = vmatprep.subr.mxu0 0.0
        %412 = vmatpush1.msra.mxu0 %v369
        %413 = vmatprep.subr.mxu0 0.0
        %414 = vmatpush1.msra.mxu0 %v364
        %415 = vmatprep.subr.mxu0 0.0
        %416 = vmatpush2.msra.mxu0 0.0
        %417 = vmatprep.subr.mxu0 0.0
        %418 = vmatpush2.msra.mxu0 0.0
        %419 = vmatprep.subr.mxu0 0.0
        %420 = vmatpush2.msra.mxu0 0.0
        %421 = vmatprep.subr.mxu0 0.0
        %422 = vmatpush2.msra.mxu0 0.0
        %423 = vmatprep.subr.mxu0 0.0
        %424 = vmatpush2.msra.mxu0 0.0
        %425 = vmatprep.subr.mxu0 0.0
        %426 = vmatpush2.msra.mxu0 0.0
        %427 = vmatprep.subr.mxu0 0.0
        %428 = vmatpush2.msra.mxu0 0.0
        %429 = vmatprep.subr.mxu0 0.0
        %430 = vmatpush2.msra.mxu0 0.0
        %431 = vmatprep.subr.mxu0 0.0
        %432 = vmatpush2.msra.mxu0 0.0
        %433 = vmatprep.subr.mxu0 0.0
        %434 = vmatpush2.msra.mxu0 0.0
        %435 = vmatprep.subr.mxu0 0.0
        %436 = vmatpush2.msra.mxu0 0.0
        %437 = vmatprep.subr.mxu0 0.0
        %438 = vmatpush2.msra.mxu0 0.0
        %439 = vmatprep.subr.mxu0 0.0
        %440 = vmatpush2.msra.mxu0 0.0
        %441 = vmatprep.subr.mxu0 0.0
        %442 = vmatpush2.msra.mxu0 0.0
        %443 = vmatprep.subr.mxu0 0.0
        %444 = vmatpush2.msra.mxu0 0.0
        %445 = vmatprep.subr.mxu0 0.0
        %446 = vmatpush2.msra.mxu0 0.0
        %447 = vmatprep.mubr.f32.mxu0 0.0
        %448 = vmatmul.mubr.f32.gmra.mxu0 %v378
        %v449 = vpop.f32.mrf.mxu0
        %v450 = vadd.f32 0.0, %v449
        %v451 = vpop.f32.mrf.mxu0
        %452 = vdwg.mxu0
        %v454 = vsel %vm200, %v175, 0
        %v457 = vsel %vm210, %v291, 0
        %459 = vmatprep.subr.mxu0 0.0
        %460 = vmatpush1.msra.mxu0 0.0
        %461 = vmatprep.subr.mxu0 0.0
        %462 = vmatpush1.msra.mxu0 0.0
        %463 = vmatprep.subr.mxu0 0.0
        %464 = vmatpush1.msra.mxu0 0.0
        %465 = vmatprep.subr.mxu0 0.0
        %466 = vmatpush1.msra.mxu0 0.0
        %467 = vmatprep.subr.mxu0 0.0
        %468 = vmatpush1.msra.mxu0 0.0
        %469 = vmatprep.subr.mxu0 0.0
        %470 = vmatpush1.msra.mxu0 0.0
        %471 = vmatprep.subr.mxu0 0.0
        %472 = vmatpush1.msra.mxu0 0.0
        %473 = vmatprep.subr.mxu0 0.0
        %474 = vmatpush1.msra.mxu0 0.0
        %475 = vmatprep.subr.mxu0 0.0
        %476 = vmatpush1.msra.mxu0 0.0
        %477 = vmatprep.subr.mxu0 0.0
        %478 = vmatpush1.msra.mxu0 0.0
        %479 = vmatprep.subr.mxu0 0.0
        %480 = vmatpush1.msra.mxu0 0.0
        %481 = vmatprep.subr.mxu0 0.0
        %482 = vmatpush1.msra.mxu0 0.0
        %483 = vmatprep.subr.mxu0 0.0
        %484 = vmatpush1.msra.mxu0 0.0
        %485 = vmatprep.subr.mxu0 0.0
        %486 = vmatpush1.msra.mxu0 %v457
        %487 = vmatprep.subr.mxu0 0.0
        %488 = vmatpush1.msra.mxu0 %v286
        %489 = vmatprep.subr.mxu0 0.0
        %490 = vmatpush1.msra.mxu0 %v281
        %491 = vmatprep.subr.mxu0 0.0
        %492 = vmatpush2.msra.mxu0 0.0
        %493 = vmatprep.subr.mxu0 0.0
        %494 = vmatpush2.msra.mxu0 0.0
        %495 = vmatprep.subr.mxu0 0.0
        %496 = vmatpush2.msra.mxu0 0.0
        %497 = vmatprep.subr.mxu0 0.0
        %498 = vmatpush2.msra.mxu0 0.0
        %499 = vmatprep.subr.mxu0 0.0
        %500 = vmatpush2.msra.mxu0 0.0
        %501 = vmatprep.subr.mxu0 0.0
        %502 = vmatpush2.msra.mxu0 0.0
        %503 = vmatprep.subr.mxu0 0.0
        %504 = vmatpush2.msra.mxu0 0.0
        %505 = vmatprep.subr.mxu0 0.0
        %506 = vmatpush2.msra.mxu0 0.0
        %507 = vmatprep.subr.mxu0 0.0
        %508 = vmatpush2.msra.mxu0 0.0
        %509 = vmatprep.subr.mxu0 0.0
        %510 = vmatpush2.msra.mxu0 0.0
        %511 = vmatprep.subr.mxu0 0.0
        %512 = vmatpush2.msra.mxu0 0.0
        %513 = vmatprep.subr.mxu0 0.0
        %514 = vmatpush2.msra.mxu0 0.0
        %515 = vmatprep.subr.mxu0 0.0
        %516 = vmatpush2.msra.mxu0 0.0
        %517 = vmatprep.subr.mxu0 0.0
        %518 = vmatpush2.msra.mxu0 0.0
        %519 = vmatprep.subr.mxu0 0.0
        %520 = vmatpush2.msra.mxu0 0.0
        %521 = vmatprep.subr.mxu0 0.0
        %522 = vmatpush2.msra.mxu0 0.0
        %523 = vmatprep.mubr.f32.mxu0 0.0
        %524 = vmatmul.mubr.f32.gmra.mxu0 %v454
        %v525 = vpop.f32.mrf.mxu0
        %v526 = vadd.f32 %v450, %v525
        %v527 = vpop.f32.mrf.mxu0
        %528 = vdwg.mxu0
        %v530 = vsel %vm210, %v192, 0
        %532 = vmatprep.subr.mxu0 0.0
        %533 = vmatpush1.msra.mxu0 0.0
        %534 = vmatprep.subr.mxu0 0.0
        %535 = vmatpush1.msra.mxu0 0.0
        %536 = vmatprep.subr.mxu0 0.0
        %537 = vmatpush1.msra.mxu0 0.0
        %538 = vmatprep.subr.mxu0 0.0
        %539 = vmatpush1.msra.mxu0 0.0
        %540 = vmatprep.subr.mxu0 0.0
        %541 = vmatpush1.msra.mxu0 0.0
        %542 = vmatprep.subr.mxu0 0.0
        %543 = vmatpush1.msra.mxu0 0.0
        %544 = vmatprep.subr.mxu0 0.0
        %545 = vmatpush1.msra.mxu0 0.0
        %546 = vmatprep.subr.mxu0 0.0
        %547 = vmatpush1.msra.mxu0 0.0
        %548 = vmatprep.subr.mxu0 0.0
        %549 = vmatpush1.msra.mxu0 0.0
        %550 = vmatprep.subr.mxu0 0.0
        %551 = vmatpush1.msra.mxu0 0.0
        %552 = vmatprep.subr.mxu0 0.0
        %553 = vmatpush1.msra.mxu0 0.0
        %554 = vmatprep.subr.mxu0 0.0
        %555 = vmatpush1.msra.mxu0 0.0
        %556 = vmatprep.subr.mxu0 0.0
        %557 = vmatpush1.msra.mxu0 0.0
        %558 = vmatprep.subr.mxu0 0.0
        %559 = vmatpush1.msra.mxu0 %v530
        %560 = vmatprep.subr.mxu0 0.0
        %561 = vmatpush1.msra.mxu0 %v191
        %562 = vmatprep.subr.mxu0 0.0
        %563 = vmatpush1.msra.mxu0 %v190
        %564 = vmatprep.subr.mxu0 0.0
        %565 = vmatpush2.msra.mxu0 0.0
        %566 = vmatprep.subr.mxu0 0.0
        %567 = vmatpush2.msra.mxu0 0.0
        %568 = vmatprep.subr.mxu0 0.0
        %569 = vmatpush2.msra.mxu0 0.0
        %570 = vmatprep.subr.mxu0 0.0
        %571 = vmatpush2.msra.mxu0 0.0
        %572 = vmatprep.subr.mxu0 0.0
        %573 = vmatpush2.msra.mxu0 0.0
        %574 = vmatprep.subr.mxu0 0.0
        %575 = vmatpush2.msra.mxu0 0.0
        %576 = vmatprep.subr.mxu0 0.0
        %577 = vmatpush2.msra.mxu0 0.0
        %578 = vmatprep.subr.mxu0 0.0
        %579 = vmatpush2.msra.mxu0 0.0
        %580 = vmatprep.subr.mxu0 0.0
        %581 = vmatpush2.msra.mxu0 0.0
        %582 = vmatprep.subr.mxu0 0.0
        %583 = vmatpush2.msra.mxu0 0.0
        %584 = vmatprep.subr.mxu0 0.0
        %585 = vmatpush2.msra.mxu0 0.0
        %586 = vmatprep.subr.mxu0 0.0
        %587 = vmatpush2.msra.mxu0 0.0
        %588 = vmatprep.subr.mxu0 0.0
        %589 = vmatpush2.msra.mxu0 0.0
        %590 = vmatprep.subr.mxu0 0.0
        %591 = vmatpush2.msra.mxu0 0.0
        %592 = vmatprep.subr.mxu0 0.0
        %593 = vmatpush2.msra.mxu0 0.0
        %594 = vmatprep.subr.mxu0 0.0
        %595 = vmatpush2.msra.mxu0 0.0
        %596 = vmatprep.mubr.f32.mxu0 0.0
        %597 = vmatmul.mubr.f32.gmra.mxu0 %v202
        %v598 = vpop.f32.mrf.mxu0
        %v599 = vadd.f32 0.0, %v598
        %v600 = vpop.f32.mrf.mxu0
        %601 = vmatprep.mubr.f32.mxu0 0.0
        %602 = vmatmul.mubr.f32.gmra.mxu0 %v205
        %v603 = vpop.f32.mrf.mxu0
        %v604 = vadd.f32 0.0, %v603
        %v605 = vpop.f32.mrf.mxu0
        %606 = vmatprep.mubr.f32.mxu0 0.0
        %607 = vmatmul.mubr.f32.gmra.mxu0 %v208
        %v608 = vpop.f32.mrf.mxu0
        %v609 = vadd.f32 0.0, %v608
        %v610 = vpop.f32.mrf.mxu0
        %611 = vdwg.mxu0
        %v613 = vsel %vm200, %v179, 0
        %v616 = vsel %vm210, %v609, 0
        %618 = vmatprep.subr.mxu0 0.0
        %619 = vmatpush1.msra.mxu0 0.0
        %620 = vmatprep.subr.mxu0 0.0
        %621 = vmatpush1.msra.mxu0 0.0
        %622 = vmatprep.subr.mxu0 0.0
        %623 = vmatpush1.msra.mxu0 0.0
        %624 = vmatprep.subr.mxu0 0.0
        %625 = vmatpush1.msra.mxu0 0.0
        %626 = vmatprep.subr.mxu0 0.0
        %627 = vmatpush1.msra.mxu0 0.0
        %628 = vmatprep.subr.mxu0 0.0
        %629 = vmatpush1.msra.mxu0 0.0
        %630 = vmatprep.subr.mxu0 0.0
        %631 = vmatpush1.msra.mxu0 0.0
        %632 = vmatprep.subr.mxu0 0.0
        %633 = vmatpush1.msra.mxu0 0.0
        %634 = vmatprep.subr.mxu0 0.0
        %635 = vmatpush1.msra.mxu0 0.0
        %636 = vmatprep.subr.mxu0 0.0
        %637 = vmatpush1.msra.mxu0 0.0
        %638 = vmatprep.subr.mxu0 0.0
        %639 = vmatpush1.msra.mxu0 0.0
        %640 = vmatprep.subr.mxu0 0.0
        %641 = vmatpush1.msra.mxu0 0.0
        %642 = vmatprep.subr.mxu0 0.0
        %643 = vmatpush1.msra.mxu0 0.0
        %644 = vmatprep.subr.mxu0 0.0
        %645 = vmatpush1.msra.mxu0 %v616
        %646 = vmatprep.subr.mxu0 0.0
        %647 = vmatpush1.msra.mxu0 %v604
        %648 = vmatprep.subr.mxu0 0.0
        %649 = vmatpush1.msra.mxu0 %v599
        %650 = vmatprep.subr.mxu0 0.0
        %651 = vmatpush2.msra.mxu0 0.0
        %652 = vmatprep.subr.mxu0 0.0
        %653 = vmatpush2.msra.mxu0 0.0
        %654 = vmatprep.subr.mxu0 0.0
        %655 = vmatpush2.msra.mxu0 0.0
        %656 = vmatprep.subr.mxu0 0.0
        %657 = vmatpush2.msra.mxu0 0.0
        %658 = vmatprep.subr.mxu0 0.0
        %659 = vmatpush2.msra.mxu0 0.0
        %660 = vmatprep.subr.mxu0 0.0
        %661 = vmatpush2.msra.mxu0 0.0
        %662 = vmatprep.subr.mxu0 0.0
        %663 = vmatpush2.msra.mxu0 0.0
        %664 = vmatprep.subr.mxu0 0.0
        %665 = vmatpush2.msra.mxu0 0.0
        %666 = vmatprep.subr.mxu0 0.0
        %667 = vmatpush2.msra.mxu0 0.0
        %668 = vmatprep.subr.mxu0 0.0
        %669 = vmatpush2.msra.mxu0 0.0
        %670 = vmatprep.subr.mxu0 0.0
        %671 = vmatpush2.msra.mxu0 0.0
        %672 = vmatprep.subr.mxu0 0.0
        %673 = vmatpush2.msra.mxu0 0.0
        %674 = vmatprep.subr.mxu0 0.0
        %675 = vmatpush2.msra.mxu0 0.0
        %676 = vmatprep.subr.mxu0 0.0
        %677 = vmatpush2.msra.mxu0 0.0
        %678 = vmatprep.subr.mxu0 0.0
        %679 = vmatpush2.msra.mxu0 0.0
        %680 = vmatprep.subr.mxu0 0.0
        %681 = vmatpush2.msra.mxu0 0.0
        %682 = vmatprep.mubr.f32.mxu0 0.0
        %683 = vmatmul.mubr.f32.gmra.mxu0 %v613
        %v684 = vpop.f32.mrf.mxu0
        %v685 = vadd.f32 0.0, %v684
        %v686 = vpop.f32.mrf.mxu0
        %687 = vdwg.mxu0
        %v688 = vadd.f32 %v526, %v685
        %v690 = vsel %vm210, %v196, 0
        %692 = vmatprep.subr.mxu0 0.0
        %693 = vmatpush1.msra.mxu0 0.0
        %694 = vmatprep.subr.mxu0 0.0
        %695 = vmatpush1.msra.mxu0 0.0
        %696 = vmatprep.subr.mxu0 0.0
        %697 = vmatpush1.msra.mxu0 0.0
        %698 = vmatprep.subr.mxu0 0.0
        %699 = vmatpush1.msra.mxu0 0.0
        %700 = vmatprep.subr.mxu0 0.0
        %701 = vmatpush1.msra.mxu0 0.0
        %702 = vmatprep.subr.mxu0 0.0
        %703 = vmatpush1.msra.mxu0 0.0
        %704 = vmatprep.subr.mxu0 0.0
        %705 = vmatpush1.msra.mxu0 0.0
        %706 = vmatprep.subr.mxu0 0.0
        %707 = vmatpush1.msra.mxu0 0.0
        %708 = vmatprep.subr.mxu0 0.0
        %709 = vmatpush1.msra.mxu0 0.0
        %710 = vmatprep.subr.mxu0 0.0
        %711 = vmatpush1.msra.mxu0 0.0
        %712 = vmatprep.subr.mxu0 0.0
        %713 = vmatpush1.msra.mxu0 0.0
        %714 = vmatprep.subr.mxu0 0.0
        %715 = vmatpush1.msra.mxu0 0.0
        %716 = vmatprep.subr.mxu0 0.0
        %717 = vmatpush1.msra.mxu0 0.0
        %718 = vmatprep.subr.mxu0 0.0
        %719 = vmatpush1.msra.mxu0 %v690
        %720 = vmatprep.subr.mxu0 0.0
        %721 = vmatpush1.msra.mxu0 %v195
        %722 = vmatprep.subr.mxu0 0.0
        %723 = vmatpush1.msra.mxu0 %v194
        %724 = vmatprep.subr.mxu0 0.0
        %725 = vmatpush2.msra.mxu0 0.0
        %726 = vmatprep.subr.mxu0 0.0
        %727 = vmatpush2.msra.mxu0 0.0
        %728 = vmatprep.subr.mxu0 0.0
        %729 = vmatpush2.msra.mxu0 0.0
        %730 = vmatprep.subr.mxu0 0.0
        %731 = vmatpush2.msra.mxu0 0.0
        %732 = vmatprep.subr.mxu0 0.0
        %733 = vmatpush2.msra.mxu0 0.0
        %734 = vmatprep.subr.mxu0 0.0
        %735 = vmatpush2.msra.mxu0 0.0
        %736 = vmatprep.subr.mxu0 0.0
        %737 = vmatpush2.msra.mxu0 0.0
        %738 = vmatprep.subr.mxu0 0.0
        %739 = vmatpush2.msra.mxu0 0.0
        %740 = vmatprep.subr.mxu0 0.0
        %741 = vmatpush2.msra.mxu0 0.0
        %742 = vmatprep.subr.mxu0 0.0
        %743 = vmatpush2.msra.mxu0 0.0
        %744 = vmatprep.subr.mxu0 0.0
        %745 = vmatpush2.msra.mxu0 0.0
        %746 = vmatprep.subr.mxu0 0.0
        %747 = vmatpush2.msra.mxu0 0.0
        %748 = vmatprep.subr.mxu0 0.0
        %749 = vmatpush2.msra.mxu0 0.0
        %750 = vmatprep.subr.mxu0 0.0
        %751 = vmatpush2.msra.mxu0 0.0
        %752 = vmatprep.subr.mxu0 0.0
        %753 = vmatpush2.msra.mxu0 0.0
        %754 = vmatprep.subr.mxu0 0.0
        %755 = vmatpush2.msra.mxu0 0.0
        %756 = vmatprep.mubr.f32.mxu0 0.0
        %757 = vmatmul.mubr.f32.gmra.mxu0 %v202
        %v758 = vpop.f32.mrf.mxu0
        %v759 = vadd.f32 0.0, %v758
        %v760 = vpop.f32.mrf.mxu0
        %761 = vmatprep.mubr.f32.mxu0 0.0
        %762 = vmatmul.mubr.f32.gmra.mxu0 %v205
        %v763 = vpop.f32.mrf.mxu0
        %v764 = vadd.f32 0.0, %v763
        %v765 = vpop.f32.mrf.mxu0
        %766 = vmatprep.mubr.f32.mxu0 0.0
        %767 = vmatmul.mubr.f32.gmra.mxu0 %v208
        %v768 = vpop.f32.mrf.mxu0
        %v769 = vadd.f32 0.0, %v768
        %v770 = vpop.f32.mrf.mxu0
        %771 = vdwg.mxu0
        %v773 = vsel %vm200, %v181, 0
        %v776 = vsel %vm210, %v769, 0
        %778 = vmatprep.subr.mxu0 0.0
        %779 = vmatpush1.msra.mxu0 0.0
        %780 = vmatprep.subr.mxu0 0.0
        %781 = vmatpush1.msra.mxu0 0.0
        %782 = vmatprep.subr.mxu0 0.0
        %783 = vmatpush1.msra.mxu0 0.0
        %784 = vmatprep.subr.mxu0 0.0
        %785 = vmatpush1.msra.mxu0 0.0
        %786 = vmatprep.subr.mxu0 0.0
        %787 = vmatpush1.msra.mxu0 0.0
        %788 = vmatprep.subr.mxu0 0.0
        %789 = vmatpush1.msra.mxu0 0.0
        %790 = vmatprep.subr.mxu0 0.0
        %791 = vmatpush1.msra.mxu0 0.0
        %792 = vmatprep.subr.mxu0 0.0
        %793 = vmatpush1.msra.mxu0 0.0
        %794 = vmatprep.subr.mxu0 0.0
        %795 = vmatpush1.msra.mxu0 0.0
        %796 = vmatprep.subr.mxu0 0.0
        %797 = vmatpush1.msra.mxu0 0.0
        %798 = vmatprep.subr.mxu0 0.0
        %799 = vmatpush1.msra.mxu0 0.0
        %800 = vmatprep.subr.mxu0 0.0
        %801 = vmatpush1.msra.mxu0 0.0
        %802 = vmatprep.subr.mxu0 0.0
        %803 = vmatpush1.msra.mxu0 0.0
        %804 = vmatprep.subr.mxu0 0.0
        %805 = vmatpush1.msra.mxu0 %v776
        %806 = vmatprep.subr.mxu0 0.0
        %807 = vmatpush1.msra.mxu0 %v764
        %808 = vmatprep.subr.mxu0 0.0
        %809 = vmatpush1.msra.mxu0 %v759
        %810 = vmatprep.subr.mxu0 0.0
        %811 = vmatpush2.msra.mxu0 0.0
        %812 = vmatprep.subr.mxu0 0.0
        %813 = vmatpush2.msra.mxu0 0.0
        %814 = vmatprep.subr.mxu0 0.0
        %815 = vmatpush2.msra.mxu0 0.0
        %816 = vmatprep.subr.mxu0 0.0
        %817 = vmatpush2.msra.mxu0 0.0
        %818 = vmatprep.subr.mxu0 0.0
        %819 = vmatpush2.msra.mxu0 0.0
        %820 = vmatprep.subr.mxu0 0.0
        %821 = vmatpush2.msra.mxu0 0.0
        %822 = vmatprep.subr.mxu0 0.0
        %823 = vmatpush2.msra.mxu0 0.0
        %824 = vmatprep.subr.mxu0 0.0
        %825 = vmatpush2.msra.mxu0 0.0
        %826 = vmatprep.subr.mxu0 0.0
        %827 = vmatpush2.msra.mxu0 0.0
        %828 = vmatprep.subr.mxu0 0.0
        %829 = vmatpush2.msra.mxu0 0.0
        %830 = vmatprep.subr.mxu0 0.0
        %831 = vmatpush2.msra.mxu0 0.0
        %832 = vmatprep.subr.mxu0 0.0
        %833 = vmatpush2.msra.mxu0 0.0
        %834 = vmatprep.subr.mxu0 0.0
        %835 = vmatpush2.msra.mxu0 0.0
        %836 = vmatprep.subr.mxu0 0.0
        %837 = vmatpush2.msra.mxu0 0.0
        %838 = vmatprep.subr.mxu0 0.0
        %839 = vmatpush2.msra.mxu0 0.0
        %840 = vmatprep.subr.mxu0 0.0
        %841 = vmatpush2.msra.mxu0 0.0
        %842 = vmatprep.mubr.f32.mxu0 0.0
        %843 = vmatmul.mubr.f32.gmra.mxu0 %v773
        %v844 = vpop.f32.mrf.mxu0
        %v845 = vadd.f32 0.0, %v844
        %v846 = vpop.f32.mrf.mxu0
        %847 = vdwg.mxu0
        %v848 = vadd.f32 %v688, %v845
        %vm849 = vcmask 64512
        %850 = vst.msk [vmem:[%s166] sm:$0xff] %vm849, %v848
        %s851 = scalar_lea.vmem %s172, 24
        %v852 = vld [vmem:[%s851] sm:$0xff]
        %v853 = vld [vmem:[%s851 + $0x8] sm:$0xff]
        %v854 = vld [vmem:[%s851 + $0x10] sm:$0x7]
        %v856 = vsel %vm200, %v852, 0
        %v859 = vsel %vm200, %v853, 0
        %v862 = vsel %vm200, %v854, 0
        %864 = vmatprep.subr.mxu0 0.0
        %865 = vmatpush1.msra.mxu0 0.0
        %866 = vmatprep.subr.mxu0 0.0
        %867 = vmatpush1.msra.mxu0 0.0
        %868 = vmatprep.subr.mxu0 0.0
        %869 = vmatpush1.msra.mxu0 0.0
        %870 = vmatprep.subr.mxu0 0.0
        %871 = vmatpush1.msra.mxu0 0.0
        %872 = vmatprep.subr.mxu0 0.0
        %873 = vmatpush1.msra.mxu0 0.0
        %874 = vmatprep.subr.mxu0 0.0
        %875 = vmatpush1.msra.mxu0 0.0
        %876 = vmatprep.subr.mxu0 0.0
        %877 = vmatpush1.msra.mxu0 0.0
        %878 = vmatprep.subr.mxu0 0.0
        %879 = vmatpush1.msra.mxu0 0.0
        %880 = vmatprep.subr.mxu0 0.0
        %881 = vmatpush1.msra.mxu0 0.0
        %882 = vmatprep.subr.mxu0 0.0
        %883 = vmatpush1.msra.mxu0 0.0
        %884 = vmatprep.subr.mxu0 0.0
        %885 = vmatpush1.msra.mxu0 0.0
        %886 = vmatprep.subr.mxu0 0.0
        %887 = vmatpush1.msra.mxu0 0.0
        %888 = vmatprep.subr.mxu0 0.0
        %889 = vmatpush1.msra.mxu0 0.0
        %890 = vmatprep.subr.mxu0 0.0
        %891 = vmatpush1.msra.mxu0 %v212
        %892 = vmatprep.subr.mxu0 0.0
        %893 = vmatpush1.msra.mxu0 %v183
        %894 = vmatprep.subr.mxu0 0.0
        %895 = vmatpush1.msra.mxu0 %v182
        %896 = vmatprep.subr.mxu0 0.0
        %897 = vmatpush2.msra.mxu0 0.0
        %898 = vmatprep.subr.mxu0 0.0
        %899 = vmatpush2.msra.mxu0 0.0
        %900 = vmatprep.subr.mxu0 0.0
        %901 = vmatpush2.msra.mxu0 0.0
        %902 = vmatprep.subr.mxu0 0.0
        %903 = vmatpush2.msra.mxu0 0.0
        %904 = vmatprep.subr.mxu0 0.0
        %905 = vmatpush2.msra.mxu0 0.0
        %906 = vmatprep.subr.mxu0 0.0
        %907 = vmatpush2.msra.mxu0 0.0
        %908 = vmatprep.subr.mxu0 0.0
        %909 = vmatpush2.msra.mxu0 0.0
        %910 = vmatprep.subr.mxu0 0.0
        %911 = vmatpush2.msra.mxu0 0.0
        %912 = vmatprep.subr.mxu0 0.0
        %913 = vmatpush2.msra.mxu0 0.0
        %914 = vmatprep.subr.mxu0 0.0
        %915 = vmatpush2.msra.mxu0 0.0
        %916 = vmatprep.subr.mxu0 0.0
        %917 = vmatpush2.msra.mxu0 0.0
        %918 = vmatprep.subr.mxu0 0.0
        %919 = vmatpush2.msra.mxu0 0.0
        %920 = vmatprep.subr.mxu0 0.0
        %921 = vmatpush2.msra.mxu0 0.0
        %922 = vmatprep.subr.mxu0 0.0
        %923 = vmatpush2.msra.mxu0 0.0
        %924 = vmatprep.subr.mxu0 0.0
        %925 = vmatpush2.msra.mxu0 0.0
        %926 = vmatprep.subr.mxu0 0.0
        %927 = vmatpush2.msra.mxu0 0.0
        %928 = vmatprep.mubr.f32.mxu0 0.0
        %929 = vmatmul.mubr.f32.gmra.mxu0 %v856
        %v930 = vpop.f32.mrf.mxu0
        %v931 = vadd.f32 0.0, %v930
        %v932 = vpop.f32.mrf.mxu0
        %933 = vmatprep.mubr.f32.mxu0 0.0
        %934 = vmatmul.mubr.f32.gmra.mxu0 %v859
        %v935 = vpop.f32.mrf.mxu0
        %v936 = vadd.f32 0.0, %v935
        %v937 = vpop.f32.mrf.mxu0
        %938 = vmatprep.mubr.f32.mxu0 0.0
        %939 = vmatmul.mubr.f32.gmra.mxu0 %v862
        %v940 = vpop.f32.mrf.mxu0
        %v941 = vadd.f32 0.0, %v940
        %v942 = vpop.f32.mrf.mxu0
        %943 = vdwg.mxu0
        %944 = vmatprep.subr.mxu0 0.0
        %945 = vmatpush1.msra.mxu0 0.0
        %946 = vmatprep.subr.mxu0 0.0
        %947 = vmatpush1.msra.mxu0 0.0
        %948 = vmatprep.subr.mxu0 0.0
        %949 = vmatpush1.msra.mxu0 0.0
        %950 = vmatprep.subr.mxu0 0.0
        %951 = vmatpush1.msra.mxu0 0.0
        %952 = vmatprep.subr.mxu0 0.0
        %953 = vmatpush1.msra.mxu0 0.0
        %954 = vmatprep.subr.mxu0 0.0
        %955 = vmatpush1.msra.mxu0 0.0
        %956 = vmatprep.subr.mxu0 0.0
        %957 = vmatpush1.msra.mxu0 0.0
        %958 = vmatprep.subr.mxu0 0.0
        %959 = vmatpush1.msra.mxu0 0.0
        %960 = vmatprep.subr.mxu0 0.0
        %961 = vmatpush1.msra.mxu0 0.0
        %962 = vmatprep.subr.mxu0 0.0
        %963 = vmatpush1.msra.mxu0 0.0
        %964 = vmatprep.subr.mxu0 0.0
        %965 = vmatpush1.msra.mxu0 0.0
        %966 = vmatprep.subr.mxu0 0.0
        %967 = vmatpush1.msra.mxu0 0.0
        %968 = vmatprep.subr.mxu0 0.0
        %969 = vmatpush1.msra.mxu0 0.0
        %970 = vmatprep.subr.mxu0 0.0
        %971 = vmatpush1.msra.mxu0 %v295
        %972 = vmatprep.subr.mxu0 0.0
        %973 = vmatpush1.msra.mxu0 %v187
        %974 = vmatprep.subr.mxu0 0.0
        %975 = vmatpush1.msra.mxu0 %v186
        %976 = vmatprep.subr.mxu0 0.0
        %977 = vmatpush2.msra.mxu0 0.0
        %978 = vmatprep.subr.mxu0 0.0
        %979 = vmatpush2.msra.mxu0 0.0
        %980 = vmatprep.subr.mxu0 0.0
        %981 = vmatpush2.msra.mxu0 0.0
        %982 = vmatprep.subr.mxu0 0.0
        %983 = vmatpush2.msra.mxu0 0.0
        %984 = vmatprep.subr.mxu0 0.0
        %985 = vmatpush2.msra.mxu0 0.0
        %986 = vmatprep.subr.mxu0 0.0
        %987 = vmatpush2.msra.mxu0 0.0
        %988 = vmatprep.subr.mxu0 0.0
        %989 = vmatpush2.msra.mxu0 0.0
        %990 = vmatprep.subr.mxu0 0.0
        %991 = vmatpush2.msra.mxu0 0.0
        %992 = vmatprep.subr.mxu0 0.0
        %993 = vmatpush2.msra.mxu0 0.0
        %994 = vmatprep.subr.mxu0 0.0
        %995 = vmatpush2.msra.mxu0 0.0
        %996 = vmatprep.subr.mxu0 0.0
        %997 = vmatpush2.msra.mxu0 0.0
        %998 = vmatprep.subr.mxu0 0.0
        %999 = vmatpush2.msra.mxu0 0.0
        %1000 = vmatprep.subr.mxu0 0.0
        %1001 = vmatpush2.msra.mxu0 0.0
        %1002 = vmatprep.subr.mxu0 0.0
        %1003 = vmatpush2.msra.mxu0 0.0
        %1004 = vmatprep.subr.mxu0 0.0
        %1005 = vmatpush2.msra.mxu0 0.0
        %1006 = vmatprep.subr.mxu0 0.0
        %1007 = vmatpush2.msra.mxu0 0.0
        %1008 = vmatprep.mubr.f32.mxu0 0.0
        %1009 = vmatmul.mubr.f32.gmra.mxu0 %v856
        %v1010 = vpop.f32.mrf.mxu0
        %v1011 = vadd.f32 0.0, %v1010
        %v1012 = vpop.f32.mrf.mxu0
        %1013 = vmatprep.mubr.f32.mxu0 0.0
        %1014 = vmatmul.mubr.f32.gmra.mxu0 %v859
        %v1015 = vpop.f32.mrf.mxu0
        %v1016 = vadd.f32 0.0, %v1015
        %v1017 = vpop.f32.mrf.mxu0
        %1018 = vmatprep.mubr.f32.mxu0 0.0
        %1019 = vmatmul.mubr.f32.gmra.mxu0 %v862
        %v1020 = vpop.f32.mrf.mxu0
        %v1021 = vadd.f32 0.0, %v1020
        %v1022 = vpop.f32.mrf.mxu0
        %1023 = vdwg.mxu0
        %v1025 = vsel %vm210, %v1021, 0
        %1027 = vmatprep.subr.mxu0 0.0
        %1028 = vmatpush1.msra.mxu0 0.0
        %1029 = vmatprep.subr.mxu0 0.0
        %1030 = vmatpush1.msra.mxu0 0.0
        %1031 = vmatprep.subr.mxu0 0.0
        %1032 = vmatpush1.msra.mxu0 0.0
        %1033 = vmatprep.subr.mxu0 0.0
        %1034 = vmatpush1.msra.mxu0 0.0
        %1035 = vmatprep.subr.mxu0 0.0
        %1036 = vmatpush1.msra.mxu0 0.0
        %1037 = vmatprep.subr.mxu0 0.0
        %1038 = vmatpush1.msra.mxu0 0.0
        %1039 = vmatprep.subr.mxu0 0.0
        %1040 = vmatpush1.msra.mxu0 0.0
        %1041 = vmatprep.subr.mxu0 0.0
        %1042 = vmatpush1.msra.mxu0 0.0
        %1043 = vmatprep.subr.mxu0 0.0
        %1044 = vmatpush1.msra.mxu0 0.0
        %1045 = vmatprep.subr.mxu0 0.0
        %1046 = vmatpush1.msra.mxu0 0.0
        %1047 = vmatprep.subr.mxu0 0.0
        %1048 = vmatpush1.msra.mxu0 0.0
        %1049 = vmatprep.subr.mxu0 0.0
        %1050 = vmatpush1.msra.mxu0 0.0
        %1051 = vmatprep.subr.mxu0 0.0
        %1052 = vmatpush1.msra.mxu0 0.0
        %1053 = vmatprep.subr.mxu0 0.0
        %1054 = vmatpush1.msra.mxu0 %v1025
        %1055 = vmatprep.subr.mxu0 0.0
        %1056 = vmatpush1.msra.mxu0 %v1016
        %1057 = vmatprep.subr.mxu0 0.0
        %1058 = vmatpush1.msra.mxu0 %v1011
        %1059 = vmatprep.subr.mxu0 0.0
        %1060 = vmatpush2.msra.mxu0 0.0
        %1061 = vmatprep.subr.mxu0 0.0
        %1062 = vmatpush2.msra.mxu0 0.0
        %1063 = vmatprep.subr.mxu0 0.0
        %1064 = vmatpush2.msra.mxu0 0.0
        %1065 = vmatprep.subr.mxu0 0.0
        %1066 = vmatpush2.msra.mxu0 0.0
        %1067 = vmatprep.subr.mxu0 0.0
        %1068 = vmatpush2.msra.mxu0 0.0
        %1069 = vmatprep.subr.mxu0 0.0
        %1070 = vmatpush2.msra.mxu0 0.0
        %1071 = vmatprep.subr.mxu0 0.0
        %1072 = vmatpush2.msra.mxu0 0.0
        %1073 = vmatprep.subr.mxu0 0.0
        %1074 = vmatpush2.msra.mxu0 0.0
        %1075 = vmatprep.subr.mxu0 0.0
        %1076 = vmatpush2.msra.mxu0 0.0
        %1077 = vmatprep.subr.mxu0 0.0
        %1078 = vmatpush2.msra.mxu0 0.0
        %1079 = vmatprep.subr.mxu0 0.0
        %1080 = vmatpush2.msra.mxu0 0.0
        %1081 = vmatprep.subr.mxu0 0.0
        %1082 = vmatpush2.msra.mxu0 0.0
        %1083 = vmatprep.subr.mxu0 0.0
        %1084 = vmatpush2.msra.mxu0 0.0
        %1085 = vmatprep.subr.mxu0 0.0
        %1086 = vmatpush2.msra.mxu0 0.0
        %1087 = vmatprep.subr.mxu0 0.0
        %1088 = vmatpush2.msra.mxu0 0.0
        %1089 = vmatprep.subr.mxu0 0.0
        %1090 = vmatpush2.msra.mxu0 0.0
        %1091 = vmatprep.mubr.f32.mxu0 0.0
        %1092 = vmatmul.mubr.f32.gmra.mxu0 %v378
        %v1093 = vpop.f32.mrf.mxu0
        %v1094 = vadd.f32 0.0, %v1093
        %v1095 = vpop.f32.mrf.mxu0
        %1096 = vdwg.mxu0
        %v1098 = vsel %vm210, %v941, 0
        %1100 = vmatprep.subr.mxu0 0.0
        %1101 = vmatpush1.msra.mxu0 0.0
        %1102 = vmatprep.subr.mxu0 0.0
        %1103 = vmatpush1.msra.mxu0 0.0
        %1104 = vmatprep.subr.mxu0 0.0
        %1105 = vmatpush1.msra.mxu0 0.0
        %1106 = vmatprep.subr.mxu0 0.0
        %1107 = vmatpush1.msra.mxu0 0.0
        %1108 = vmatprep.subr.mxu0 0.0
        %1109 = vmatpush1.msra.mxu0 0.0
        %1110 = vmatprep.subr.mxu0 0.0
        %1111 = vmatpush1.msra.mxu0 0.0
        %1112 = vmatprep.subr.mxu0 0.0
        %1113 = vmatpush1.msra.mxu0 0.0
        %1114 = vmatprep.subr.mxu0 0.0
        %1115 = vmatpush1.msra.mxu0 0.0
        %1116 = vmatprep.subr.mxu0 0.0
        %1117 = vmatpush1.msra.mxu0 0.0
        %1118 = vmatprep.subr.mxu0 0.0
        %1119 = vmatpush1.msra.mxu0 0.0
        %1120 = vmatprep.subr.mxu0 0.0
        %1121 = vmatpush1.msra.mxu0 0.0
        %1122 = vmatprep.subr.mxu0 0.0
        %1123 = vmatpush1.msra.mxu0 0.0
        %1124 = vmatprep.subr.mxu0 0.0
        %1125 = vmatpush1.msra.mxu0 0.0
        %1126 = vmatprep.subr.mxu0 0.0
        %1127 = vmatpush1.msra.mxu0 %v1098
        %1128 = vmatprep.subr.mxu0 0.0
        %1129 = vmatpush1.msra.mxu0 %v936
        %1130 = vmatprep.subr.mxu0 0.0
        %1131 = vmatpush1.msra.mxu0 %v931
        %1132 = vmatprep.subr.mxu0 0.0
        %1133 = vmatpush2.msra.mxu0 0.0
        %1134 = vmatprep.subr.mxu0 0.0
        %1135 = vmatpush2.msra.mxu0 0.0
        %1136 = vmatprep.subr.mxu0 0.0
        %1137 = vmatpush2.msra.mxu0 0.0
        %1138 = vmatprep.subr.mxu0 0.0
        %1139 = vmatpush2.msra.mxu0 0.0
        %1140 = vmatprep.subr.mxu0 0.0
        %1141 = vmatpush2.msra.mxu0 0.0
        %1142 = vmatprep.subr.mxu0 0.0
        %1143 = vmatpush2.msra.mxu0 0.0
        %1144 = vmatprep.subr.mxu0 0.0
        %1145 = vmatpush2.msra.mxu0 0.0
        %1146 = vmatprep.subr.mxu0 0.0
        %1147 = vmatpush2.msra.mxu0 0.0
        %1148 = vmatprep.subr.mxu0 0.0
        %1149 = vmatpush2.msra.mxu0 0.0
        %1150 = vmatprep.subr.mxu0 0.0
        %1151 = vmatpush2.msra.mxu0 0.0
        %1152 = vmatprep.subr.mxu0 0.0
        %1153 = vmatpush2.msra.mxu0 0.0
        %1154 = vmatprep.subr.mxu0 0.0
        %1155 = vmatpush2.msra.mxu0 0.0
        %1156 = vmatprep.subr.mxu0 0.0
        %1157 = vmatpush2.msra.mxu0 0.0
        %1158 = vmatprep.subr.mxu0 0.0
        %1159 = vmatpush2.msra.mxu0 0.0
        %1160 = vmatprep.subr.mxu0 0.0
        %1161 = vmatpush2.msra.mxu0 0.0
        %1162 = vmatprep.subr.mxu0 0.0
        %1163 = vmatpush2.msra.mxu0 0.0
        %1164 = vmatprep.mubr.f32.mxu0 0.0
        %1165 = vmatmul.mubr.f32.gmra.mxu0 %v454
        %v1166 = vpop.f32.mrf.mxu0
        %v1167 = vadd.f32 %v1094, %v1166
        %v1168 = vpop.f32.mrf.mxu0
        %1169 = vdwg.mxu0
        %1170 = vmatprep.subr.mxu0 0.0
        %1171 = vmatpush1.msra.mxu0 0.0
        %1172 = vmatprep.subr.mxu0 0.0
        %1173 = vmatpush1.msra.mxu0 0.0
        %1174 = vmatprep.subr.mxu0 0.0
        %1175 = vmatpush1.msra.mxu0 0.0
        %1176 = vmatprep.subr.mxu0 0.0
        %1177 = vmatpush1.msra.mxu0 0.0
        %1178 = vmatprep.subr.mxu0 0.0
        %1179 = vmatpush1.msra.mxu0 0.0
        %1180 = vmatprep.subr.mxu0 0.0
        %1181 = vmatpush1.msra.mxu0 0.0
        %1182 = vmatprep.subr.mxu0 0.0
        %1183 = vmatpush1.msra.mxu0 0.0
        %1184 = vmatprep.subr.mxu0 0.0
        %1185 = vmatpush1.msra.mxu0 0.0
        %1186 = vmatprep.subr.mxu0 0.0
        %1187 = vmatpush1.msra.mxu0 0.0
        %1188 = vmatprep.subr.mxu0 0.0
        %1189 = vmatpush1.msra.mxu0 0.0
        %1190 = vmatprep.subr.mxu0 0.0
        %1191 = vmatpush1.msra.mxu0 0.0
        %1192 = vmatprep.subr.mxu0 0.0
        %1193 = vmatpush1.msra.mxu0 0.0
        %1194 = vmatprep.subr.mxu0 0.0
        %1195 = vmatpush1.msra.mxu0 0.0
        %1196 = vmatprep.subr.mxu0 0.0
        %1197 = vmatpush1.msra.mxu0 %v530
        %1198 = vmatprep.subr.mxu0 0.0
        %1199 = vmatpush1.msra.mxu0 %v191
        %1200 = vmatprep.subr.mxu0 0.0
        %1201 = vmatpush1.msra.mxu0 %v190
        %1202 = vmatprep.subr.mxu0 0.0
        %1203 = vmatpush2.msra.mxu0 0.0
        %1204 = vmatprep.subr.mxu0 0.0
        %1205 = vmatpush2.msra.mxu0 0.0
        %1206 = vmatprep.subr.mxu0 0.0
        %1207 = vmatpush2.msra.mxu0 0.0
        %1208 = vmatprep.subr.mxu0 0.0
        %1209 = vmatpush2.msra.mxu0 0.0
        %1210 = vmatprep.subr.mxu0 0.0
        %1211 = vmatpush2.msra.mxu0 0.0
        %1212 = vmatprep.subr.mxu0 0.0
        %1213 = vmatpush2.msra.mxu0 0.0
        %1214 = vmatprep.subr.mxu0 0.0
        %1215 = vmatpush2.msra.mxu0 0.0
        %1216 = vmatprep.subr.mxu0 0.0
        %1217 = vmatpush2.msra.mxu0 0.0
        %1218 = vmatprep.subr.mxu0 0.0
        %1219 = vmatpush2.msra.mxu0 0.0
        %1220 = vmatprep.subr.mxu0 0.0
        %1221 = vmatpush2.msra.mxu0 0.0
        %1222 = vmatprep.subr.mxu0 0.0
        %1223 = vmatpush2.msra.mxu0 0.0
        %1224 = vmatprep.subr.mxu0 0.0
        %1225 = vmatpush2.msra.mxu0 0.0
        %1226 = vmatprep.subr.mxu0 0.0
        %1227 = vmatpush2.msra.mxu0 0.0
        %1228 = vmatprep.subr.mxu0 0.0
        %1229 = vmatpush2.msra.mxu0 0.0
        %1230 = vmatprep.subr.mxu0 0.0
        %1231 = vmatpush2.msra.mxu0 0.0
        %1232 = vmatprep.subr.mxu0 0.0
        %1233 = vmatpush2.msra.mxu0 0.0
        %1234 = vmatprep.mubr.f32.mxu0 0.0
        %1235 = vmatmul.mubr.f32.gmra.mxu0 %v856
        %v1236 = vpop.f32.mrf.mxu0
        %v1237 = vadd.f32 0.0, %v1236
        %v1238 = vpop.f32.mrf.mxu0
        %1239 = vmatprep.mubr.f32.mxu0 0.0
        %1240 = vmatmul.mubr.f32.gmra.mxu0 %v859
        %v1241 = vpop.f32.mrf.mxu0
        %v1242 = vadd.f32 0.0, %v1241
        %v1243 = vpop.f32.mrf.mxu0
        %1244 = vmatprep.mubr.f32.mxu0 0.0
        %1245 = vmatmul.mubr.f32.gmra.mxu0 %v862
        %v1246 = vpop.f32.mrf.mxu0
        %v1247 = vadd.f32 0.0, %v1246
        %v1248 = vpop.f32.mrf.mxu0
        %1249 = vdwg.mxu0
        %v1251 = vsel %vm210, %v1247, 0
        %1253 = vmatprep.subr.mxu0 0.0
        %1254 = vmatpush1.msra.mxu0 0.0
        %1255 = vmatprep.subr.mxu0 0.0
        %1256 = vmatpush1.msra.mxu0 0.0
        %1257 = vmatprep.subr.mxu0 0.0
        %1258 = vmatpush1.msra.mxu0 0.0
        %1259 = vmatprep.subr.mxu0 0.0
        %1260 = vmatpush1.msra.mxu0 0.0
        %1261 = vmatprep.subr.mxu0 0.0
        %1262 = vmatpush1.msra.mxu0 0.0
        %1263 = vmatprep.subr.mxu0 0.0
        %1264 = vmatpush1.msra.mxu0 0.0
        %1265 = vmatprep.subr.mxu0 0.0
        %1266 = vmatpush1.msra.mxu0 0.0
        %1267 = vmatprep.subr.mxu0 0.0
        %1268 = vmatpush1.msra.mxu0 0.0
        %1269 = vmatprep.subr.mxu0 0.0
        %1270 = vmatpush1.msra.mxu0 0.0
        %1271 = vmatprep.subr.mxu0 0.0
        %1272 = vmatpush1.msra.mxu0 0.0
        %1273 = vmatprep.subr.mxu0 0.0
        %1274 = vmatpush1.msra.mxu0 0.0
        %1275 = vmatprep.subr.mxu0 0.0
        %1276 = vmatpush1.msra.mxu0 0.0
        %1277 = vmatprep.subr.mxu0 0.0
        %1278 = vmatpush1.msra.mxu0 0.0
        %1279 = vmatprep.subr.mxu0 0.0
        %1280 = vmatpush1.msra.mxu0 %v1251
        %1281 = vmatprep.subr.mxu0 0.0
        %1282 = vmatpush1.msra.mxu0 %v1242
        %1283 = vmatprep.subr.mxu0 0.0
        %1284 = vmatpush1.msra.mxu0 %v1237
        %1285 = vmatprep.subr.mxu0 0.0
        %1286 = vmatpush2.msra.mxu0 0.0
        %1287 = vmatprep.subr.mxu0 0.0
        %1288 = vmatpush2.msra.mxu0 0.0
        %1289 = vmatprep.subr.mxu0 0.0
        %1290 = vmatpush2.msra.mxu0 0.0
        %1291 = vmatprep.subr.mxu0 0.0
        %1292 = vmatpush2.msra.mxu0 0.0
        %1293 = vmatprep.subr.mxu0 0.0
        %1294 = vmatpush2.msra.mxu0 0.0
        %1295 = vmatprep.subr.mxu0 0.0
        %1296 = vmatpush2.msra.mxu0 0.0
        %1297 = vmatprep.subr.mxu0 0.0
        %1298 = vmatpush2.msra.mxu0 0.0
        %1299 = vmatprep.subr.mxu0 0.0
        %1300 = vmatpush2.msra.mxu0 0.0
        %1301 = vmatprep.subr.mxu0 0.0
        %1302 = vmatpush2.msra.mxu0 0.0
        %1303 = vmatprep.subr.mxu0 0.0
        %1304 = vmatpush2.msra.mxu0 0.0
        %1305 = vmatprep.subr.mxu0 0.0
        %1306 = vmatpush2.msra.mxu0 0.0
        %1307 = vmatprep.subr.mxu0 0.0
        %1308 = vmatpush2.msra.mxu0 0.0
        %1309 = vmatprep.subr.mxu0 0.0
        %1310 = vmatpush2.msra.mxu0 0.0
        %1311 = vmatprep.subr.mxu0 0.0
        %1312 = vmatpush2.msra.mxu0 0.0
        %1313 = vmatprep.subr.mxu0 0.0
        %1314 = vmatpush2.msra.mxu0 0.0
        %1315 = vmatprep.subr.mxu0 0.0
        %1316 = vmatpush2.msra.mxu0 0.0
        %1317 = vmatprep.mubr.f32.mxu0 0.0
        %1318 = vmatmul.mubr.f32.gmra.mxu0 %v613
        %v1319 = vpop.f32.mrf.mxu0
        %v1320 = vadd.f32 0.0, %v1319
        %v1321 = vpop.f32.mrf.mxu0
        %1322 = vdwg.mxu0
        %v1323 = vadd.f32 %v1167, %v1320
        %1324 = vmatprep.subr.mxu0 0.0
        %1325 = vmatpush1.msra.mxu0 0.0
        %1326 = vmatprep.subr.mxu0 0.0
        %1327 = vmatpush1.msra.mxu0 0.0
        %1328 = vmatprep.subr.mxu0 0.0
        %1329 = vmatpush1.msra.mxu0 0.0
        %1330 = vmatprep.subr.mxu0 0.0
        %1331 = vmatpush1.msra.mxu0 0.0
        %1332 = vmatprep.subr.mxu0 0.0
        %1333 = vmatpush1.msra.mxu0 0.0
        %1334 = vmatprep.subr.mxu0 0.0
        %1335 = vmatpush1.msra.mxu0 0.0
        %1336 = vmatprep.subr.mxu0 0.0
        %1337 = vmatpush1.msra.mxu0 0.0
        %1338 = vmatprep.subr.mxu0 0.0
        %1339 = vmatpush1.msra.mxu0 0.0
        %1340 = vmatprep.subr.mxu0 0.0
        %1341 = vmatpush1.msra.mxu0 0.0
        %1342 = vmatprep.subr.mxu0 0.0
        %1343 = vmatpush1.msra.mxu0 0.0
        %1344 = vmatprep.subr.mxu0 0.0
        %1345 = vmatpush1.msra.mxu0 0.0
        %1346 = vmatprep.subr.mxu0 0.0
        %1347 = vmatpush1.msra.mxu0 0.0
        %1348 = vmatprep.subr.mxu0 0.0
        %1349 = vmatpush1.msra.mxu0 0.0
        %1350 = vmatprep.subr.mxu0 0.0
        %1351 = vmatpush1.msra.mxu0 %v690
        %1352 = vmatprep.subr.mxu0 0.0
        %1353 = vmatpush1.msra.mxu0 %v195
        %1354 = vmatprep.subr.mxu0 0.0
        %1355 = vmatpush1.msra.mxu0 %v194
        %1356 = vmatprep.subr.mxu0 0.0
        %1357 = vmatpush2.msra.mxu0 0.0
        %1358 = vmatprep.subr.mxu0 0.0
        %1359 = vmatpush2.msra.mxu0 0.0
        %1360 = vmatprep.subr.mxu0 0.0
        %1361 = vmatpush2.msra.mxu0 0.0
        %1362 = vmatprep.subr.mxu0 0.0
        %1363 = vmatpush2.msra.mxu0 0.0
        %1364 = vmatprep.subr.mxu0 0.0
        %1365 = vmatpush2.msra.mxu0 0.0
        %1366 = vmatprep.subr.mxu0 0.0
        %1367 = vmatpush2.msra.mxu0 0.0
        %1368 = vmatprep.subr.mxu0 0.0
        %1369 = vmatpush2.msra.mxu0 0.0
        %1370 = vmatprep.subr.mxu0 0.0
        %1371 = vmatpush2.msra.mxu0 0.0
        %1372 = vmatprep.subr.mxu0 0.0
        %1373 = vmatpush2.msra.mxu0 0.0
        %1374 = vmatprep.subr.mxu0 0.0
        %1375 = vmatpush2.msra.mxu0 0.0
        %1376 = vmatprep.subr.mxu0 0.0
        %1377 = vmatpush2.msra.mxu0 0.0
        %1378 = vmatprep.subr.mxu0 0.0
        %1379 = vmatpush2.msra.mxu0 0.0
        %1380 = vmatprep.subr.mxu0 0.0
        %1381 = vmatpush2.msra.mxu0 0.0
        %1382 = vmatprep.subr.mxu0 0.0
        %1383 = vmatpush2.msra.mxu0 0.0
        %1384 = vmatprep.subr.mxu0 0.0
        %1385 = vmatpush2.msra.mxu0 0.0
        %1386 = vmatprep.subr.mxu0 0.0
        %1387 = vmatpush2.msra.mxu0 0.0
        %1388 = vmatprep.mubr.f32.mxu0 0.0
        %1389 = vmatmul.mubr.f32.gmra.mxu0 %v856
        %v1390 = vpop.f32.mrf.mxu0
        %v1391 = vadd.f32 0.0, %v1390
        %v1392 = vpop.f32.mrf.mxu0
        %1393 = vmatprep.mubr.f32.mxu0 0.0
        %1394 = vmatmul.mubr.f32.gmra.mxu0 %v859
        %v1395 = vpop.f32.mrf.mxu0
        %v1396 = vadd.f32 0.0, %v1395
        %v1397 = vpop.f32.mrf.mxu0
        %1398 = vmatprep.mubr.f32.mxu0 0.0
        %1399 = vmatmul.mubr.f32.gmra.mxu0 %v862
        %v1400 = vpop.f32.mrf.mxu0
        %v1401 = vadd.f32 0.0, %v1400
        %v1402 = vpop.f32.mrf.mxu0
        %1403 = vdwg.mxu0
        %v1405 = vsel %vm210, %v1401, 0
        %1407 = vmatprep.subr.mxu0 0.0
        %1408 = vmatpush1.msra.mxu0 0.0
        %1409 = vmatprep.subr.mxu0 0.0
        %1410 = vmatpush1.msra.mxu0 0.0
        %1411 = vmatprep.subr.mxu0 0.0
        %1412 = vmatpush1.msra.mxu0 0.0
        %1413 = vmatprep.subr.mxu0 0.0
        %1414 = vmatpush1.msra.mxu0 0.0
        %1415 = vmatprep.subr.mxu0 0.0
        %1416 = vmatpush1.msra.mxu0 0.0
        %1417 = vmatprep.subr.mxu0 0.0
        %1418 = vmatpush1.msra.mxu0 0.0
        %1419 = vmatprep.subr.mxu0 0.0
        %1420 = vmatpush1.msra.mxu0 0.0
        %1421 = vmatprep.subr.mxu0 0.0
        %1422 = vmatpush1.msra.mxu0 0.0
        %1423 = vmatprep.subr.mxu0 0.0
        %1424 = vmatpush1.msra.mxu0 0.0
        %1425 = vmatprep.subr.mxu0 0.0
        %1426 = vmatpush1.msra.mxu0 0.0
        %1427 = vmatprep.subr.mxu0 0.0
        %1428 = vmatpush1.msra.mxu0 0.0
        %1429 = vmatprep.subr.mxu0 0.0
        %1430 = vmatpush1.msra.mxu0 0.0
        %1431 = vmatprep.subr.mxu0 0.0
        %1432 = vmatpush1.msra.mxu0 0.0
        %1433 = vmatprep.subr.mxu0 0.0
        %1434 = vmatpush1.msra.mxu0 %v1405
        %1435 = vmatprep.subr.mxu0 0.0
        %1436 = vmatpush1.msra.mxu0 %v1396
        %1437 = vmatprep.subr.mxu0 0.0
        %1438 = vmatpush1.msra.mxu0 %v1391
        %1439 = vmatprep.subr.mxu0 0.0
        %1440 = vmatpush2.msra.mxu0 0.0
        %1441 = vmatprep.subr.mxu0 0.0
        %1442 = vmatpush2.msra.mxu0 0.0
        %1443 = vmatprep.subr.mxu0 0.0
        %1444 = vmatpush2.msra.mxu0 0.0
        %1445 = vmatprep.subr.mxu0 0.0
        %1446 = vmatpush2.msra.mxu0 0.0
        %1447 = vmatprep.subr.mxu0 0.0
        %1448 = vmatpush2.msra.mxu0 0.0
        %1449 = vmatprep.subr.mxu0 0.0
        %1450 = vmatpush2.msra.mxu0 0.0
        %1451 = vmatprep.subr.mxu0 0.0
        %1452 = vmatpush2.msra.mxu0 0.0
        %1453 = vmatprep.subr.mxu0 0.0
        %1454 = vmatpush2.msra.mxu0 0.0
        %1455 = vmatprep.subr.mxu0 0.0
        %1456 = vmatpush2.msra.mxu0 0.0
        %1457 = vmatprep.subr.mxu0 0.0
        %1458 = vmatpush2.msra.mxu0 0.0
        %1459 = vmatprep.subr.mxu0 0.0
        %1460 = vmatpush2.msra.mxu0 0.0
        %1461 = vmatprep.subr.mxu0 0.0
        %1462 = vmatpush2.msra.mxu0 0.0
        %1463 = vmatprep.subr.mxu0 0.0
        %1464 = vmatpush2.msra.mxu0 0.0
        %1465 = vmatprep.subr.mxu0 0.0
        %1466 = vmatpush2.msra.mxu0 0.0
        %1467 = vmatprep.subr.mxu0 0.0
        %1468 = vmatpush2.msra.mxu0 0.0
        %1469 = vmatprep.subr.mxu0 0.0
        %1470 = vmatpush2.msra.mxu0 0.0
        %1471 = vmatprep.mubr.f32.mxu0 0.0
        %1472 = vmatmul.mubr.f32.gmra.mxu0 %v773
        %v1473 = vpop.f32.mrf.mxu0
        %v1474 = vadd.f32 0.0, %v1473
        %v1475 = vpop.f32.mrf.mxu0
        %1476 = vdwg.mxu0
        %v1477 = vadd.f32 %v1323, %v1474
        %s1478 = scalar_lea.vmem %s166, 8 [#allocation2]
        %1479 = vst.msk [vmem:[%s1478] sm:$0xff] %vm849, %v1477
        %s1480 = scalar_lea.vmem %s172, 48
        %v1481 = vld [vmem:[%s1480] sm:$0xff]
        %v1482 = vld [vmem:[%s1480 + $0x8] sm:$0xff]
        %v1483 = vld [vmem:[%s1480 + $0x10] sm:$0x7]
        %v1485 = vsel %vm200, %v1481, 0
        %v1488 = vsel %vm200, %v1482, 0
        %v1491 = vsel %vm200, %v1483, 0
        %1493 = vmatprep.subr.mxu0 0.0
        %1494 = vmatpush1.msra.mxu0 0.0
        %1495 = vmatprep.subr.mxu0 0.0
        %1496 = vmatpush1.msra.mxu0 0.0
        %1497 = vmatprep.subr.mxu0 0.0
        %1498 = vmatpush1.msra.mxu0 0.0
        %1499 = vmatprep.subr.mxu0 0.0
        %1500 = vmatpush1.msra.mxu0 0.0
        %1501 = vmatprep.subr.mxu0 0.0
        %1502 = vmatpush1.msra.mxu0 0.0
        %1503 = vmatprep.subr.mxu0 0.0
        %1504 = vmatpush1.msra.mxu0 0.0
        %1505 = vmatprep.subr.mxu0 0.0
        %1506 = vmatpush1.msra.mxu0 0.0
        %1507 = vmatprep.subr.mxu0 0.0
        %1508 = vmatpush1.msra.mxu0 0.0
        %1509 = vmatprep.subr.mxu0 0.0
        %1510 = vmatpush1.msra.mxu0 0.0
        %1511 = vmatprep.subr.mxu0 0.0
        %1512 = vmatpush1.msra.mxu0 0.0
        %1513 = vmatprep.subr.mxu0 0.0
        %1514 = vmatpush1.msra.mxu0 0.0
        %1515 = vmatprep.subr.mxu0 0.0
        %1516 = vmatpush1.msra.mxu0 0.0
        %1517 = vmatprep.subr.mxu0 0.0
        %1518 = vmatpush1.msra.mxu0 0.0
        %1519 = vmatprep.subr.mxu0 0.0
        %1520 = vmatpush1.msra.mxu0 %v212
        %1521 = vmatprep.subr.mxu0 0.0
        %1522 = vmatpush1.msra.mxu0 %v183
        %1523 = vmatprep.subr.mxu0 0.0
        %1524 = vmatpush1.msra.mxu0 %v182
        %1525 = vmatprep.subr.mxu0 0.0
        %1526 = vmatpush2.msra.mxu0 0.0
        %1527 = vmatprep.subr.mxu0 0.0
        %1528 = vmatpush2.msra.mxu0 0.0
        %1529 = vmatprep.subr.mxu0 0.0
        %1530 = vmatpush2.msra.mxu0 0.0
        %1531 = vmatprep.subr.mxu0 0.0
        %1532 = vmatpush2.msra.mxu0 0.0
        %1533 = vmatprep.subr.mxu0 0.0
        %1534 = vmatpush2.msra.mxu0 0.0
        %1535 = vmatprep.subr.mxu0 0.0
        %1536 = vmatpush2.msra.mxu0 0.0
        %1537 = vmatprep.subr.mxu0 0.0
        %1538 = vmatpush2.msra.mxu0 0.0
        %1539 = vmatprep.subr.mxu0 0.0
        %1540 = vmatpush2.msra.mxu0 0.0
        %1541 = vmatprep.subr.mxu0 0.0
        %1542 = vmatpush2.msra.mxu0 0.0
        %1543 = vmatprep.subr.mxu0 0.0
        %1544 = vmatpush2.msra.mxu0 0.0
        %1545 = vmatprep.subr.mxu0 0.0
        %1546 = vmatpush2.msra.mxu0 0.0
        %1547 = vmatprep.subr.mxu0 0.0
        %1548 = vmatpush2.msra.mxu0 0.0
        %1549 = vmatprep.subr.mxu0 0.0
        %1550 = vmatpush2.msra.mxu0 0.0
        %1551 = vmatprep.subr.mxu0 0.0
        %1552 = vmatpush2.msra.mxu0 0.0
        %1553 = vmatprep.subr.mxu0 0.0
        %1554 = vmatpush2.msra.mxu0 0.0
        %1555 = vmatprep.subr.mxu0 0.0
        %1556 = vmatpush2.msra.mxu0 0.0
        %1557 = vmatprep.mubr.f32.mxu0 0.0
        %1558 = vmatmul.mubr.f32.gmra.mxu0 %v1485
        %v1559 = vpop.f32.mrf.mxu0
        %v1560 = vadd.f32 0.0, %v1559
        %v1561 = vpop.f32.mrf.mxu0
        %1562 = vmatprep.mubr.f32.mxu0 0.0
        %1563 = vmatmul.mubr.f32.gmra.mxu0 %v1488
        %v1564 = vpop.f32.mrf.mxu0
        %v1565 = vadd.f32 0.0, %v1564
        %v1566 = vpop.f32.mrf.mxu0
        %1567 = vmatprep.mubr.f32.mxu0 0.0
        %1568 = vmatmul.mubr.f32.gmra.mxu0 %v1491
        %v1569 = vpop.f32.mrf.mxu0
        %v1570 = vadd.f32 0.0, %v1569
        %v1571 = vpop.f32.mrf.mxu0
        %1572 = vdwg.mxu0
        %1573 = vmatprep.subr.mxu0 0.0
        %1574 = vmatpush1.msra.mxu0 0.0
        %1575 = vmatprep.subr.mxu0 0.0
        %1576 = vmatpush1.msra.mxu0 0.0
        %1577 = vmatprep.subr.mxu0 0.0
        %1578 = vmatpush1.msra.mxu0 0.0
        %1579 = vmatprep.subr.mxu0 0.0
        %1580 = vmatpush1.msra.mxu0 0.0
        %1581 = vmatprep.subr.mxu0 0.0
        %1582 = vmatpush1.msra.mxu0 0.0
        %1583 = vmatprep.subr.mxu0 0.0
        %1584 = vmatpush1.msra.mxu0 0.0
        %1585 = vmatprep.subr.mxu0 0.0
        %1586 = vmatpush1.msra.mxu0 0.0
        %1587 = vmatprep.subr.mxu0 0.0
        %1588 = vmatpush1.msra.mxu0 0.0
        %1589 = vmatprep.subr.mxu0 0.0
        %1590 = vmatpush1.msra.mxu0 0.0
        %1591 = vmatprep.subr.mxu0 0.0
        %1592 = vmatpush1.msra.mxu0 0.0
        %1593 = vmatprep.subr.mxu0 0.0
        %1594 = vmatpush1.msra.mxu0 0.0
        %1595 = vmatprep.subr.mxu0 0.0
        %1596 = vmatpush1.msra.mxu0 0.0
        %1597 = vmatprep.subr.mxu0 0.0
        %1598 = vmatpush1.msra.mxu0 0.0
        %1599 = vmatprep.subr.mxu0 0.0
        %1600 = vmatpush1.msra.mxu0 %v295
        %1601 = vmatprep.subr.mxu0 0.0
        %1602 = vmatpush1.msra.mxu0 %v187
        %1603 = vmatprep.subr.mxu0 0.0
        %1604 = vmatpush1.msra.mxu0 %v186
        %1605 = vmatprep.subr.mxu0 0.0
        %1606 = vmatpush2.msra.mxu0 0.0
        %1607 = vmatprep.subr.mxu0 0.0
        %1608 = vmatpush2.msra.mxu0 0.0
        %1609 = vmatprep.subr.mxu0 0.0
        %1610 = vmatpush2.msra.mxu0 0.0
        %1611 = vmatprep.subr.mxu0 0.0
        %1612 = vmatpush2.msra.mxu0 0.0
        %1613 = vmatprep.subr.mxu0 0.0
        %1614 = vmatpush2.msra.mxu0 0.0
        %1615 = vmatprep.subr.mxu0 0.0
        %1616 = vmatpush2.msra.mxu0 0.0
        %1617 = vmatprep.subr.mxu0 0.0
        %1618 = vmatpush2.msra.mxu0 0.0
        %1619 = vmatprep.subr.mxu0 0.0
        %1620 = vmatpush2.msra.mxu0 0.0
        %1621 = vmatprep.subr.mxu0 0.0
        %1622 = vmatpush2.msra.mxu0 0.0
        %1623 = vmatprep.subr.mxu0 0.0
        %1624 = vmatpush2.msra.mxu0 0.0
        %1625 = vmatprep.subr.mxu0 0.0
        %1626 = vmatpush2.msra.mxu0 0.0
        %1627 = vmatprep.subr.mxu0 0.0
        %1628 = vmatpush2.msra.mxu0 0.0
        %1629 = vmatprep.subr.mxu0 0.0
        %1630 = vmatpush2.msra.mxu0 0.0
        %1631 = vmatprep.subr.mxu0 0.0
        %1632 = vmatpush2.msra.mxu0 0.0
        %1633 = vmatprep.subr.mxu0 0.0
        %1634 = vmatpush2.msra.mxu0 0.0
        %1635 = vmatprep.subr.mxu0 0.0
        %1636 = vmatpush2.msra.mxu0 0.0
        %1637 = vmatprep.mubr.f32.mxu0 0.0
        %1638 = vmatmul.mubr.f32.gmra.mxu0 %v1485
        %v1639 = vpop.f32.mrf.mxu0
        %v1640 = vadd.f32 0.0, %v1639
        %v1641 = vpop.f32.mrf.mxu0
        %1642 = vmatprep.mubr.f32.mxu0 0.0
        %1643 = vmatmul.mubr.f32.gmra.mxu0 %v1488
        %v1644 = vpop.f32.mrf.mxu0
        %v1645 = vadd.f32 0.0, %v1644
        %v1646 = vpop.f32.mrf.mxu0
        %1647 = vmatprep.mubr.f32.mxu0 0.0
        %1648 = vmatmul.mubr.f32.gmra.mxu0 %v1491
        %v1649 = vpop.f32.mrf.mxu0
        %v1650 = vadd.f32 0.0, %v1649
        %v1651 = vpop.f32.mrf.mxu0
        %1652 = vdwg.mxu0
        %v1654 = vsel %vm210, %v1650, 0
        %1656 = vmatprep.subr.mxu0 0.0
        %1657 = vmatpush1.msra.mxu0 0.0
        %1658 = vmatprep.subr.mxu0 0.0
        %1659 = vmatpush1.msra.mxu0 0.0
        %1660 = vmatprep.subr.mxu0 0.0
        %1661 = vmatpush1.msra.mxu0 0.0
        %1662 = vmatprep.subr.mxu0 0.0
        %1663 = vmatpush1.msra.mxu0 0.0
        %1664 = vmatprep.subr.mxu0 0.0
        %1665 = vmatpush1.msra.mxu0 0.0
        %1666 = vmatprep.subr.mxu0 0.0
        %1667 = vmatpush1.msra.mxu0 0.0
        %1668 = vmatprep.subr.mxu0 0.0
        %1669 = vmatpush1.msra.mxu0 0.0
        %1670 = vmatprep.subr.mxu0 0.0
        %1671 = vmatpush1.msra.mxu0 0.0
        %1672 = vmatprep.subr.mxu0 0.0
        %1673 = vmatpush1.msra.mxu0 0.0
        %1674 = vmatprep.subr.mxu0 0.0
        %1675 = vmatpush1.msra.mxu0 0.0
        %1676 = vmatprep.subr.mxu0 0.0
        %1677 = vmatpush1.msra.mxu0 0.0
        %1678 = vmatprep.subr.mxu0 0.0
        %1679 = vmatpush1.msra.mxu0 0.0
        %1680 = vmatprep.subr.mxu0 0.0
        %1681 = vmatpush1.msra.mxu0 0.0
        %1682 = vmatprep.subr.mxu0 0.0
        %1683 = vmatpush1.msra.mxu0 %v1654
        %1684 = vmatprep.subr.mxu0 0.0
        %1685 = vmatpush1.msra.mxu0 %v1645
        %1686 = vmatprep.subr.mxu0 0.0
        %1687 = vmatpush1.msra.mxu0 %v1640
        %1688 = vmatprep.subr.mxu0 0.0
        %1689 = vmatpush2.msra.mxu0 0.0
        %1690 = vmatprep.subr.mxu0 0.0
        %1691 = vmatpush2.msra.mxu0 0.0
        %1692 = vmatprep.subr.mxu0 0.0
        %1693 = vmatpush2.msra.mxu0 0.0
        %1694 = vmatprep.subr.mxu0 0.0
        %1695 = vmatpush2.msra.mxu0 0.0
        %1696 = vmatprep.subr.mxu0 0.0
        %1697 = vmatpush2.msra.mxu0 0.0
        %1698 = vmatprep.subr.mxu0 0.0
        %1699 = vmatpush2.msra.mxu0 0.0
        %1700 = vmatprep.subr.mxu0 0.0
        %1701 = vmatpush2.msra.mxu0 0.0
        %1702 = vmatprep.subr.mxu0 0.0
        %1703 = vmatpush2.msra.mxu0 0.0
        %1704 = vmatprep.subr.mxu0 0.0
        %1705 = vmatpush2.msra.mxu0 0.0
        %1706 = vmatprep.subr.mxu0 0.0
        %1707 = vmatpush2.msra.mxu0 0.0
        %1708 = vmatprep.subr.mxu0 0.0
        %1709 = vmatpush2.msra.mxu0 0.0
        %1710 = vmatprep.subr.mxu0 0.0
        %1711 = vmatpush2.msra.mxu0 0.0
        %1712 = vmatprep.subr.mxu0 0.0
        %1713 = vmatpush2.msra.mxu0 0.0
        %1714 = vmatprep.subr.mxu0 0.0
        %1715 = vmatpush2.msra.mxu0 0.0
        %1716 = vmatprep.subr.mxu0 0.0
        %1717 = vmatpush2.msra.mxu0 0.0
        %1718 = vmatprep.subr.mxu0 0.0
        %1719 = vmatpush2.msra.mxu0 0.0
        %1720 = vmatprep.mubr.f32.mxu0 0.0
        %1721 = vmatmul.mubr.f32.gmra.mxu0 %v378
        %v1722 = vpop.f32.mrf.mxu0
        %v1723 = vadd.f32 0.0, %v1722
        %v1724 = vpop.f32.mrf.mxu0
        %1725 = vdwg.mxu0
        %v1727 = vsel %vm210, %v1570, 0
        %1729 = vmatprep.subr.mxu0 0.0
        %1730 = vmatpush1.msra.mxu0 0.0
        %1731 = vmatprep.subr.mxu0 0.0
        %1732 = vmatpush1.msra.mxu0 0.0
        %1733 = vmatprep.subr.mxu0 0.0
        %1734 = vmatpush1.msra.mxu0 0.0
        %1735 = vmatprep.subr.mxu0 0.0
        %1736 = vmatpush1.msra.mxu0 0.0
        %1737 = vmatprep.subr.mxu0 0.0
        %1738 = vmatpush1.msra.mxu0 0.0
        %1739 = vmatprep.subr.mxu0 0.0
        %1740 = vmatpush1.msra.mxu0 0.0
        %1741 = vmatprep.subr.mxu0 0.0
        %1742 = vmatpush1.msra.mxu0 0.0
        %1743 = vmatprep.subr.mxu0 0.0
        %1744 = vmatpush1.msra.mxu0 0.0
        %1745 = vmatprep.subr.mxu0 0.0
        %1746 = vmatpush1.msra.mxu0 0.0
        %1747 = vmatprep.subr.mxu0 0.0
        %1748 = vmatpush1.msra.mxu0 0.0
        %1749 = vmatprep.subr.mxu0 0.0
        %1750 = vmatpush1.msra.mxu0 0.0
        %1751 = vmatprep.subr.mxu0 0.0
        %1752 = vmatpush1.msra.mxu0 0.0
        %1753 = vmatprep.subr.mxu0 0.0
        %1754 = vmatpush1.msra.mxu0 0.0
        %1755 = vmatprep.subr.mxu0 0.0
        %1756 = vmatpush1.msra.mxu0 %v1727
        %1757 = vmatprep.subr.mxu0 0.0
        %1758 = vmatpush1.msra.mxu0 %v1565
        %1759 = vmatprep.subr.mxu0 0.0
        %1760 = vmatpush1.msra.mxu0 %v1560
        %1761 = vmatprep.subr.mxu0 0.0
        %1762 = vmatpush2.msra.mxu0 0.0
        %1763 = vmatprep.subr.mxu0 0.0
        %1764 = vmatpush2.msra.mxu0 0.0
        %1765 = vmatprep.subr.mxu0 0.0
        %1766 = vmatpush2.msra.mxu0 0.0
        %1767 = vmatprep.subr.mxu0 0.0
        %1768 = vmatpush2.msra.mxu0 0.0
        %1769 = vmatprep.subr.mxu0 0.0
        %1770 = vmatpush2.msra.mxu0 0.0
        %1771 = vmatprep.subr.mxu0 0.0
        %1772 = vmatpush2.msra.mxu0 0.0
        %1773 = vmatprep.subr.mxu0 0.0
        %1774 = vmatpush2.msra.mxu0 0.0
        %1775 = vmatprep.subr.mxu0 0.0
        %1776 = vmatpush2.msra.mxu0 0.0
        %1777 = vmatprep.subr.mxu0 0.0
        %1778 = vmatpush2.msra.mxu0 0.0
        %1779 = vmatprep.subr.mxu0 0.0
        %1780 = vmatpush2.msra.mxu0 0.0
        %1781 = vmatprep.subr.mxu0 0.0
        %1782 = vmatpush2.msra.mxu0 0.0
        %1783 = vmatprep.subr.mxu0 0.0
        %1784 = vmatpush2.msra.mxu0 0.0
        %1785 = vmatprep.subr.mxu0 0.0
        %1786 = vmatpush2.msra.mxu0 0.0
        %1787 = vmatprep.subr.mxu0 0.0
        %1788 = vmatpush2.msra.mxu0 0.0
        %1789 = vmatprep.subr.mxu0 0.0
        %1790 = vmatpush2.msra.mxu0 0.0
        %1791 = vmatprep.subr.mxu0 0.0
        %1792 = vmatpush2.msra.mxu0 0.0
        %1793 = vmatprep.mubr.f32.mxu0 0.0
        %1794 = vmatmul.mubr.f32.gmra.mxu0 %v454
        %v1795 = vpop.f32.mrf.mxu0
        %v1796 = vadd.f32 %v1723, %v1795
        %v1797 = vpop.f32.mrf.mxu0
        %1798 = vdwg.mxu0
        %1799 = vmatprep.subr.mxu0 0.0
        %1800 = vmatpush1.msra.mxu0 0.0
        %1801 = vmatprep.subr.mxu0 0.0
        %1802 = vmatpush1.msra.mxu0 0.0
        %1803 = vmatprep.subr.mxu0 0.0
        %1804 = vmatpush1.msra.mxu0 0.0
        %1805 = vmatprep.subr.mxu0 0.0
        %1806 = vmatpush1.msra.mxu0 0.0
        %1807 = vmatprep.subr.mxu0 0.0
        %1808 = vmatpush1.msra.mxu0 0.0
        %1809 = vmatprep.subr.mxu0 0.0
        %1810 = vmatpush1.msra.mxu0 0.0
        %1811 = vmatprep.subr.mxu0 0.0
        %1812 = vmatpush1.msra.mxu0 0.0
        %1813 = vmatprep.subr.mxu0 0.0
        %1814 = vmatpush1.msra.mxu0 0.0
        %1815 = vmatprep.subr.mxu0 0.0
        %1816 = vmatpush1.msra.mxu0 0.0
        %1817 = vmatprep.subr.mxu0 0.0
        %1818 = vmatpush1.msra.mxu0 0.0
        %1819 = vmatprep.subr.mxu0 0.0
        %1820 = vmatpush1.msra.mxu0 0.0
        %1821 = vmatprep.subr.mxu0 0.0
        %1822 = vmatpush1.msra.mxu0 0.0
        %1823 = vmatprep.subr.mxu0 0.0
        %1824 = vmatpush1.msra.mxu0 0.0
        %1825 = vmatprep.subr.mxu0 0.0
        %1826 = vmatpush1.msra.mxu0 %v530
        %1827 = vmatprep.subr.mxu0 0.0
        %1828 = vmatpush1.msra.mxu0 %v191
        %1829 = vmatprep.subr.mxu0 0.0
        %1830 = vmatpush1.msra.mxu0 %v190
        %1831 = vmatprep.subr.mxu0 0.0
        %1832 = vmatpush2.msra.mxu0 0.0
        %1833 = vmatprep.subr.mxu0 0.0
        %1834 = vmatpush2.msra.mxu0 0.0
        %1835 = vmatprep.subr.mxu0 0.0
        %1836 = vmatpush2.msra.mxu0 0.0
        %1837 = vmatprep.subr.mxu0 0.0
        %1838 = vmatpush2.msra.mxu0 0.0
        %1839 = vmatprep.subr.mxu0 0.0
        %1840 = vmatpush2.msra.mxu0 0.0
        %1841 = vmatprep.subr.mxu0 0.0
        %1842 = vmatpush2.msra.mxu0 0.0
        %1843 = vmatprep.subr.mxu0 0.0
        %1844 = vmatpush2.msra.mxu0 0.0
        %1845 = vmatprep.subr.mxu0 0.0
        %1846 = vmatpush2.msra.mxu0 0.0
        %1847 = vmatprep.subr.mxu0 0.0
        %1848 = vmatpush2.msra.mxu0 0.0
        %1849 = vmatprep.subr.mxu0 0.0
        %1850 = vmatpush2.msra.mxu0 0.0
        %1851 = vmatprep.subr.mxu0 0.0
        %1852 = vmatpush2.msra.mxu0 0.0
        %1853 = vmatprep.subr.mxu0 0.0
        %1854 = vmatpush2.msra.mxu0 0.0
        %1855 = vmatprep.subr.mxu0 0.0
        %1856 = vmatpush2.msra.mxu0 0.0
        %1857 = vmatprep.subr.mxu0 0.0
        %1858 = vmatpush2.msra.mxu0 0.0
        %1859 = vmatprep.subr.mxu0 0.0
        %1860 = vmatpush2.msra.mxu0 0.0
        %1861 = vmatprep.subr.mxu0 0.0
        %1862 = vmatpush2.msra.mxu0 0.0
        %1863 = vmatprep.mubr.f32.mxu0 0.0
        %1864 = vmatmul.mubr.f32.gmra.mxu0 %v1485
        %v1865 = vpop.f32.mrf.mxu0
        %v1866 = vadd.f32 0.0, %v1865
        %v1867 = vpop.f32.mrf.mxu0
        %1868 = vmatprep.mubr.f32.mxu0 0.0
        %1869 = vmatmul.mubr.f32.gmra.mxu0 %v1488
        %v1870 = vpop.f32.mrf.mxu0
        %v1871 = vadd.f32 0.0, %v1870
        %v1872 = vpop.f32.mrf.mxu0
        %1873 = vmatprep.mubr.f32.mxu0 0.0
        %1874 = vmatmul.mubr.f32.gmra.mxu0 %v1491
        %v1875 = vpop.f32.mrf.mxu0
        %v1876 = vadd.f32 0.0, %v1875
        %v1877 = vpop.f32.mrf.mxu0
        %1878 = vdwg.mxu0
        %v1880 = vsel %vm210, %v1876, 0
        %1882 = vmatprep.subr.mxu0 0.0
        %1883 = vmatpush1.msra.mxu0 0.0
        %1884 = vmatprep.subr.mxu0 0.0
        %1885 = vmatpush1.msra.mxu0 0.0
        %1886 = vmatprep.subr.mxu0 0.0
        %1887 = vmatpush1.msra.mxu0 0.0
        %1888 = vmatprep.subr.mxu0 0.0
        %1889 = vmatpush1.msra.mxu0 0.0
        %1890 = vmatprep.subr.mxu0 0.0
        %1891 = vmatpush1.msra.mxu0 0.0
        %1892 = vmatprep.subr.mxu0 0.0
        %1893 = vmatpush1.msra.mxu0 0.0
        %1894 = vmatprep.subr.mxu0 0.0
        %1895 = vmatpush1.msra.mxu0 0.0
        %1896 = vmatprep.subr.mxu0 0.0
        %1897 = vmatpush1.msra.mxu0 0.0
        %1898 = vmatprep.subr.mxu0 0.0
        %1899 = vmatpush1.msra.mxu0 0.0
        %1900 = vmatprep.subr.mxu0 0.0
        %1901 = vmatpush1.msra.mxu0 0.0
        %1902 = vmatprep.subr.mxu0 0.0
        %1903 = vmatpush1.msra.mxu0 0.0
        %1904 = vmatprep.subr.mxu0 0.0
        %1905 = vmatpush1.msra.mxu0 0.0
        %1906 = vmatprep.subr.mxu0 0.0
        %1907 = vmatpush1.msra.mxu0 0.0
        %1908 = vmatprep.subr.mxu0 0.0
        %1909 = vmatpush1.msra.mxu0 %v1880
        %1910 = vmatprep.subr.mxu0 0.0
        %1911 = vmatpush1.msra.mxu0 %v1871
        %1912 = vmatprep.subr.mxu0 0.0
        %1913 = vmatpush1.msra.mxu0 %v1866
        %1914 = vmatprep.subr.mxu0 0.0
        %1915 = vmatpush2.msra.mxu0 0.0
        %1916 = vmatprep.subr.mxu0 0.0
        %1917 = vmatpush2.msra.mxu0 0.0
        %1918 = vmatprep.subr.mxu0 0.0
        %1919 = vmatpush2.msra.mxu0 0.0
        %1920 = vmatprep.subr.mxu0 0.0
        %1921 = vmatpush2.msra.mxu0 0.0
        %1922 = vmatprep.subr.mxu0 0.0
        %1923 = vmatpush2.msra.mxu0 0.0
        %1924 = vmatprep.subr.mxu0 0.0
        %1925 = vmatpush2.msra.mxu0 0.0
        %1926 = vmatprep.subr.mxu0 0.0
        %1927 = vmatpush2.msra.mxu0 0.0
        %1928 = vmatprep.subr.mxu0 0.0
        %1929 = vmatpush2.msra.mxu0 0.0
        %1930 = vmatprep.subr.mxu0 0.0
        %1931 = vmatpush2.msra.mxu0 0.0
        %1932 = vmatprep.subr.mxu0 0.0
        %1933 = vmatpush2.msra.mxu0 0.0
        %1934 = vmatprep.subr.mxu0 0.0
        %1935 = vmatpush2.msra.mxu0 0.0
        %1936 = vmatprep.subr.mxu0 0.0
        %1937 = vmatpush2.msra.mxu0 0.0
        %1938 = vmatprep.subr.mxu0 0.0
        %1939 = vmatpush2.msra.mxu0 0.0
        %1940 = vmatprep.subr.mxu0 0.0
        %1941 = vmatpush2.msra.mxu0 0.0
        %1942 = vmatprep.subr.mxu0 0.0
        %1943 = vmatpush2.msra.mxu0 0.0
        %1944 = vmatprep.subr.mxu0 0.0
        %1945 = vmatpush2.msra.mxu0 0.0
        %1946 = vmatprep.mubr.f32.mxu0 0.0
        %1947 = vmatmul.mubr.f32.gmra.mxu0 %v613
        %v1948 = vpop.f32.mrf.mxu0
        %v1949 = vadd.f32 0.0, %v1948
        %v1950 = vpop.f32.mrf.mxu0
        %1951 = vdwg.mxu0
        %v1952 = vadd.f32 %v1796, %v1949
        %1953 = vmatprep.subr.mxu0 0.0
        %1954 = vmatpush1.msra.mxu0 0.0
        %1955 = vmatprep.subr.mxu0 0.0
        %1956 = vmatpush1.msra.mxu0 0.0
        %1957 = vmatprep.subr.mxu0 0.0
        %1958 = vmatpush1.msra.mxu0 0.0
        %1959 = vmatprep.subr.mxu0 0.0
        %1960 = vmatpush1.msra.mxu0 0.0
        %1961 = vmatprep.subr.mxu0 0.0
        %1962 = vmatpush1.msra.mxu0 0.0
        %1963 = vmatprep.subr.mxu0 0.0
        %1964 = vmatpush1.msra.mxu0 0.0
        %1965 = vmatprep.subr.mxu0 0.0
        %1966 = vmatpush1.msra.mxu0 0.0
        %1967 = vmatprep.subr.mxu0 0.0
        %1968 = vmatpush1.msra.mxu0 0.0
        %1969 = vmatprep.subr.mxu0 0.0
        %1970 = vmatpush1.msra.mxu0 0.0
        %1971 = vmatprep.subr.mxu0 0.0
        %1972 = vmatpush1.msra.mxu0 0.0
        %1973 = vmatprep.subr.mxu0 0.0
        %1974 = vmatpush1.msra.mxu0 0.0
        %1975 = vmatprep.subr.mxu0 0.0
        %1976 = vmatpush1.msra.mxu0 0.0
        %1977 = vmatprep.subr.mxu0 0.0
        %1978 = vmatpush1.msra.mxu0 0.0
        %1979 = vmatprep.subr.mxu0 0.0
        %1980 = vmatpush1.msra.mxu0 %v690
        %1981 = vmatprep.subr.mxu0 0.0
        %1982 = vmatpush1.msra.mxu0 %v195
        %1983 = vmatprep.subr.mxu0 0.0
        %1984 = vmatpush1.msra.mxu0 %v194
        %1985 = vmatprep.subr.mxu0 0.0
        %1986 = vmatpush2.msra.mxu0 0.0
        %1987 = vmatprep.subr.mxu0 0.0
        %1988 = vmatpush2.msra.mxu0 0.0
        %1989 = vmatprep.subr.mxu0 0.0
        %1990 = vmatpush2.msra.mxu0 0.0
        %1991 = vmatprep.subr.mxu0 0.0
        %1992 = vmatpush2.msra.mxu0 0.0
        %1993 = vmatprep.subr.mxu0 0.0
        %1994 = vmatpush2.msra.mxu0 0.0
        %1995 = vmatprep.subr.mxu0 0.0
        %1996 = vmatpush2.msra.mxu0 0.0
        %1997 = vmatprep.subr.mxu0 0.0
        %1998 = vmatpush2.msra.mxu0 0.0
        %1999 = vmatprep.subr.mxu0 0.0
        %2000 = vmatpush2.msra.mxu0 0.0
        %2001 = vmatprep.subr.mxu0 0.0
        %2002 = vmatpush2.msra.mxu0 0.0
        %2003 = vmatprep.subr.mxu0 0.0
        %2004 = vmatpush2.msra.mxu0 0.0
        %2005 = vmatprep.subr.mxu0 0.0
        %2006 = vmatpush2.msra.mxu0 0.0
        %2007 = vmatprep.subr.mxu0 0.0
        %2008 = vmatpush2.msra.mxu0 0.0
        %2009 = vmatprep.subr.mxu0 0.0
        %2010 = vmatpush2.msra.mxu0 0.0
        %2011 = vmatprep.subr.mxu0 0.0
        %2012 = vmatpush2.msra.mxu0 0.0
        %2013 = vmatprep.subr.mxu0 0.0
        %2014 = vmatpush2.msra.mxu0 0.0
        %2015 = vmatprep.subr.mxu0 0.0
        %2016 = vmatpush2.msra.mxu0 0.0
        %2017 = vmatprep.mubr.f32.mxu0 0.0
        %2018 = vmatmul.mubr.f32.gmra.mxu0 %v1485
        %v2019 = vpop.f32.mrf.mxu0
        %v2020 = vadd.f32 0.0, %v2019
        %v2021 = vpop.f32.mrf.mxu0
        %2022 = vmatprep.mubr.f32.mxu0 0.0
        %2023 = vmatmul.mubr.f32.gmra.mxu0 %v1488
        %v2024 = vpop.f32.mrf.mxu0
        %v2025 = vadd.f32 0.0, %v2024
        %v2026 = vpop.f32.mrf.mxu0
        %2027 = vmatprep.mubr.f32.mxu0 0.0
        %2028 = vmatmul.mubr.f32.gmra.mxu0 %v1491
        %v2029 = vpop.f32.mrf.mxu0
        %v2030 = vadd.f32 0.0, %v2029
        %v2031 = vpop.f32.mrf.mxu0
        %2032 = vdwg.mxu0
        %v2034 = vsel %vm210, %v2030, 0
        %2036 = vmatprep.subr.mxu0 0.0
        %2037 = vmatpush1.msra.mxu0 0.0
        %2038 = vmatprep.subr.mxu0 0.0
        %2039 = vmatpush1.msra.mxu0 0.0
        %2040 = vmatprep.subr.mxu0 0.0
        %2041 = vmatpush1.msra.mxu0 0.0
        %2042 = vmatprep.subr.mxu0 0.0
        %2043 = vmatpush1.msra.mxu0 0.0
        %2044 = vmatprep.subr.mxu0 0.0
        %2045 = vmatpush1.msra.mxu0 0.0
        %2046 = vmatprep.subr.mxu0 0.0
        %2047 = vmatpush1.msra.mxu0 0.0
        %2048 = vmatprep.subr.mxu0 0.0
        %2049 = vmatpush1.msra.mxu0 0.0
        %2050 = vmatprep.subr.mxu0 0.0
        %2051 = vmatpush1.msra.mxu0 0.0
        %2052 = vmatprep.subr.mxu0 0.0
        %2053 = vmatpush1.msra.mxu0 0.0
        %2054 = vmatprep.subr.mxu0 0.0
        %2055 = vmatpush1.msra.mxu0 0.0
        %2056 = vmatprep.subr.mxu0 0.0
        %2057 = vmatpush1.msra.mxu0 0.0
        %2058 = vmatprep.subr.mxu0 0.0
        %2059 = vmatpush1.msra.mxu0 0.0
        %2060 = vmatprep.subr.mxu0 0.0
        %2061 = vmatpush1.msra.mxu0 0.0
        %2062 = vmatprep.subr.mxu0 0.0
        %2063 = vmatpush1.msra.mxu0 %v2034
        %2064 = vmatprep.subr.mxu0 0.0
        %2065 = vmatpush1.msra.mxu0 %v2025
        %2066 = vmatprep.subr.mxu0 0.0
        %2067 = vmatpush1.msra.mxu0 %v2020
        %2068 = vmatprep.subr.mxu0 0.0
        %2069 = vmatpush2.msra.mxu0 0.0
        %2070 = vmatprep.subr.mxu0 0.0
        %2071 = vmatpush2.msra.mxu0 0.0
        %2072 = vmatprep.subr.mxu0 0.0
        %2073 = vmatpush2.msra.mxu0 0.0
        %2074 = vmatprep.subr.mxu0 0.0
        %2075 = vmatpush2.msra.mxu0 0.0
        %2076 = vmatprep.subr.mxu0 0.0
        %2077 = vmatpush2.msra.mxu0 0.0
        %2078 = vmatprep.subr.mxu0 0.0
        %2079 = vmatpush2.msra.mxu0 0.0
        %2080 = vmatprep.subr.mxu0 0.0
        %2081 = vmatpush2.msra.mxu0 0.0
        %2082 = vmatprep.subr.mxu0 0.0
        %2083 = vmatpush2.msra.mxu0 0.0
        %2084 = vmatprep.subr.mxu0 0.0
        %2085 = vmatpush2.msra.mxu0 0.0
        %2086 = vmatprep.subr.mxu0 0.0
        %2087 = vmatpush2.msra.mxu0 0.0
        %2088 = vmatprep.subr.mxu0 0.0
        %2089 = vmatpush2.msra.mxu0 0.0
        %2090 = vmatprep.subr.mxu0 0.0
        %2091 = vmatpush2.msra.mxu0 0.0
        %2092 = vmatprep.subr.mxu0 0.0
        %2093 = vmatpush2.msra.mxu0 0.0
        %2094 = vmatprep.subr.mxu0 0.0
        %2095 = vmatpush2.msra.mxu0 0.0
        %2096 = vmatprep.subr.mxu0 0.0
        %2097 = vmatpush2.msra.mxu0 0.0
        %2098 = vmatprep.subr.mxu0 0.0
        %2099 = vmatpush2.msra.mxu0 0.0
        %2100 = vmatprep.mubr.f32.mxu0 0.0
        %2101 = vmatmul.mubr.f32.gmra.mxu0 %v773
        %v2102 = vpop.f32.mrf.mxu0
        %v2103 = vadd.f32 0.0, %v2102
        %v2104 = vpop.f32.mrf.mxu0
        %2105 = vdwg.mxu0
        %v2106 = vadd.f32 %v1952, %v2103
        %s2107 = scalar_lea.vmem %s166, 16 [#allocation2]
        %2108 = vst.msk [vmem:[%s2107] sm:$0xff] %vm849, %v2106
        %s2109 = scalar_lea.vmem %s172, 72
        %v2110 = vld [vmem:[%s2109] sm:$0xff]
        %v2111 = vld [vmem:[%s2109 + $0x8] sm:$0xff]
        %v2112 = vld [vmem:[%s2109 + $0x10] sm:$0x7]
        %v2114 = vsel %vm200, %v2110, 0
        %v2117 = vsel %vm200, %v2111, 0
        %v2120 = vsel %vm200, %v2112, 0
        %2122 = vmatprep.subr.mxu0 0.0
        %2123 = vmatpush1.msra.mxu0 0.0
        %2124 = vmatprep.subr.mxu0 0.0
        %2125 = vmatpush1.msra.mxu0 0.0
        %2126 = vmatprep.subr.mxu0 0.0
        %2127 = vmatpush1.msra.mxu0 0.0
        %2128 = vmatprep.subr.mxu0 0.0
        %2129 = vmatpush1.msra.mxu0 0.0
        %2130 = vmatprep.subr.mxu0 0.0
        %2131 = vmatpush1.msra.mxu0 0.0
        %2132 = vmatprep.subr.mxu0 0.0
        %2133 = vmatpush1.msra.mxu0 0.0
        %2134 = vmatprep.subr.mxu0 0.0
        %2135 = vmatpush1.msra.mxu0 0.0
        %2136 = vmatprep.subr.mxu0 0.0
        %2137 = vmatpush1.msra.mxu0 0.0
        %2138 = vmatprep.subr.mxu0 0.0
        %2139 = vmatpush1.msra.mxu0 0.0
        %2140 = vmatprep.subr.mxu0 0.0
        %2141 = vmatpush1.msra.mxu0 0.0
        %2142 = vmatprep.subr.mxu0 0.0
        %2143 = vmatpush1.msra.mxu0 0.0
        %2144 = vmatprep.subr.mxu0 0.0
        %2145 = vmatpush1.msra.mxu0 0.0
        %2146 = vmatprep.subr.mxu0 0.0
        %2147 = vmatpush1.msra.mxu0 0.0
        %2148 = vmatprep.subr.mxu0 0.0
        %2149 = vmatpush1.msra.mxu0 %v212
        %2150 = vmatprep.subr.mxu0 0.0
        %2151 = vmatpush1.msra.mxu0 %v183
        %2152 = vmatprep.subr.mxu0 0.0
        %2153 = vmatpush1.msra.mxu0 %v182
        %2154 = vmatprep.subr.mxu0 0.0
        %2155 = vmatpush2.msra.mxu0 0.0
        %2156 = vmatprep.subr.mxu0 0.0
        %2157 = vmatpush2.msra.mxu0 0.0
        %2158 = vmatprep.subr.mxu0 0.0
        %2159 = vmatpush2.msra.mxu0 0.0
        %2160 = vmatprep.subr.mxu0 0.0
        %2161 = vmatpush2.msra.mxu0 0.0
        %2162 = vmatprep.subr.mxu0 0.0
        %2163 = vmatpush2.msra.mxu0 0.0
        %2164 = vmatprep.subr.mxu0 0.0
        %2165 = vmatpush2.msra.mxu0 0.0
        %2166 = vmatprep.subr.mxu0 0.0
        %2167 = vmatpush2.msra.mxu0 0.0
        %2168 = vmatprep.subr.mxu0 0.0
        %2169 = vmatpush2.msra.mxu0 0.0
        %2170 = vmatprep.subr.mxu0 0.0
        %2171 = vmatpush2.msra.mxu0 0.0
        %2172 = vmatprep.subr.mxu0 0.0
        %2173 = vmatpush2.msra.mxu0 0.0
        %2174 = vmatprep.subr.mxu0 0.0
        %2175 = vmatpush2.msra.mxu0 0.0
        %2176 = vmatprep.subr.mxu0 0.0
        %2177 = vmatpush2.msra.mxu0 0.0
        %2178 = vmatprep.subr.mxu0 0.0
        %2179 = vmatpush2.msra.mxu0 0.0
        %2180 = vmatprep.subr.mxu0 0.0
        %2181 = vmatpush2.msra.mxu0 0.0
        %2182 = vmatprep.subr.mxu0 0.0
        %2183 = vmatpush2.msra.mxu0 0.0
        %2184 = vmatprep.subr.mxu0 0.0
        %2185 = vmatpush2.msra.mxu0 0.0
        %2186 = vmatprep.mubr.f32.mxu0 0.0
        %2187 = vmatmul.mubr.f32.gmra.mxu0 %v2114
        %v2188 = vpop.f32.mrf.mxu0
        %v2189 = vadd.f32 0.0, %v2188
        %v2190 = vpop.f32.mrf.mxu0
        %2191 = vmatprep.mubr.f32.mxu0 0.0
        %2192 = vmatmul.mubr.f32.gmra.mxu0 %v2117
        %v2193 = vpop.f32.mrf.mxu0
        %v2194 = vadd.f32 0.0, %v2193
        %v2195 = vpop.f32.mrf.mxu0
        %2196 = vmatprep.mubr.f32.mxu0 0.0
        %2197 = vmatmul.mubr.f32.gmra.mxu0 %v2120
        %v2198 = vpop.f32.mrf.mxu0
        %v2199 = vadd.f32 0.0, %v2198
        %v2200 = vpop.f32.mrf.mxu0
        %2201 = vdwg.mxu0
        %2202 = vmatprep.subr.mxu0 0.0
        %2203 = vmatpush1.msra.mxu0 0.0
        %2204 = vmatprep.subr.mxu0 0.0
        %2205 = vmatpush1.msra.mxu0 0.0
        %2206 = vmatprep.subr.mxu0 0.0
        %2207 = vmatpush1.msra.mxu0 0.0
        %2208 = vmatprep.subr.mxu0 0.0
        %2209 = vmatpush1.msra.mxu0 0.0
        %2210 = vmatprep.subr.mxu0 0.0
        %2211 = vmatpush1.msra.mxu0 0.0
        %2212 = vmatprep.subr.mxu0 0.0
        %2213 = vmatpush1.msra.mxu0 0.0
        %2214 = vmatprep.subr.mxu0 0.0
        %2215 = vmatpush1.msra.mxu0 0.0
        %2216 = vmatprep.subr.mxu0 0.0
        %2217 = vmatpush1.msra.mxu0 0.0
        %2218 = vmatprep.subr.mxu0 0.0
        %2219 = vmatpush1.msra.mxu0 0.0
        %2220 = vmatprep.subr.mxu0 0.0
        %2221 = vmatpush1.msra.mxu0 0.0
        %2222 = vmatprep.subr.mxu0 0.0
        %2223 = vmatpush1.msra.mxu0 0.0
        %2224 = vmatprep.subr.mxu0 0.0
        %2225 = vmatpush1.msra.mxu0 0.0
        %2226 = vmatprep.subr.mxu0 0.0
        %2227 = vmatpush1.msra.mxu0 0.0
        %2228 = vmatprep.subr.mxu0 0.0
        %2229 = vmatpush1.msra.mxu0 %v295
        %2230 = vmatprep.subr.mxu0 0.0
        %2231 = vmatpush1.msra.mxu0 %v187
        %2232 = vmatprep.subr.mxu0 0.0
        %2233 = vmatpush1.msra.mxu0 %v186
        %2234 = vmatprep.subr.mxu0 0.0
        %2235 = vmatpush2.msra.mxu0 0.0
        %2236 = vmatprep.subr.mxu0 0.0
        %2237 = vmatpush2.msra.mxu0 0.0
        %2238 = vmatprep.subr.mxu0 0.0
        %2239 = vmatpush2.msra.mxu0 0.0
        %2240 = vmatprep.subr.mxu0 0.0
        %2241 = vmatpush2.msra.mxu0 0.0
        %2242 = vmatprep.subr.mxu0 0.0
        %2243 = vmatpush2.msra.mxu0 0.0
        %2244 = vmatprep.subr.mxu0 0.0
        %2245 = vmatpush2.msra.mxu0 0.0
        %2246 = vmatprep.subr.mxu0 0.0
        %2247 = vmatpush2.msra.mxu0 0.0
        %2248 = vmatprep.subr.mxu0 0.0
        %2249 = vmatpush2.msra.mxu0 0.0
        %2250 = vmatprep.subr.mxu0 0.0
        %2251 = vmatpush2.msra.mxu0 0.0
        %2252 = vmatprep.subr.mxu0 0.0
        %2253 = vmatpush2.msra.mxu0 0.0
        %2254 = vmatprep.subr.mxu0 0.0
        %2255 = vmatpush2.msra.mxu0 0.0
        %2256 = vmatprep.subr.mxu0 0.0
        %2257 = vmatpush2.msra.mxu0 0.0
        %2258 = vmatprep.subr.mxu0 0.0
        %2259 = vmatpush2.msra.mxu0 0.0
        %2260 = vmatprep.subr.mxu0 0.0
        %2261 = vmatpush2.msra.mxu0 0.0
        %2262 = vmatprep.subr.mxu0 0.0
        %2263 = vmatpush2.msra.mxu0 0.0
        %2264 = vmatprep.subr.mxu0 0.0
        %2265 = vmatpush2.msra.mxu0 0.0
        %2266 = vmatprep.mubr.f32.mxu0 0.0
        %2267 = vmatmul.mubr.f32.gmra.mxu0 %v2114
        %v2268 = vpop.f32.mrf.mxu0
        %v2269 = vadd.f32 0.0, %v2268
        %v2270 = vpop.f32.mrf.mxu0
        %2271 = vmatprep.mubr.f32.mxu0 0.0
        %2272 = vmatmul.mubr.f32.gmra.mxu0 %v2117
        %v2273 = vpop.f32.mrf.mxu0
        %v2274 = vadd.f32 0.0, %v2273
        %v2275 = vpop.f32.mrf.mxu0
        %2276 = vmatprep.mubr.f32.mxu0 0.0
        %2277 = vmatmul.mubr.f32.gmra.mxu0 %v2120
        %v2278 = vpop.f32.mrf.mxu0
        %v2279 = vadd.f32 0.0, %v2278
        %v2280 = vpop.f32.mrf.mxu0
        %2281 = vdwg.mxu0
        %v2283 = vsel %vm210, %v2279, 0
        %2285 = vmatprep.subr.mxu0 0.0
        %2286 = vmatpush1.msra.mxu0 0.0
        %2287 = vmatprep.subr.mxu0 0.0
        %2288 = vmatpush1.msra.mxu0 0.0
        %2289 = vmatprep.subr.mxu0 0.0
        %2290 = vmatpush1.msra.mxu0 0.0
        %2291 = vmatprep.subr.mxu0 0.0
        %2292 = vmatpush1.msra.mxu0 0.0
        %2293 = vmatprep.subr.mxu0 0.0
        %2294 = vmatpush1.msra.mxu0 0.0
        %2295 = vmatprep.subr.mxu0 0.0
        %2296 = vmatpush1.msra.mxu0 0.0
        %2297 = vmatprep.subr.mxu0 0.0
        %2298 = vmatpush1.msra.mxu0 0.0
        %2299 = vmatprep.subr.mxu0 0.0
        %2300 = vmatpush1.msra.mxu0 0.0
        %2301 = vmatprep.subr.mxu0 0.0
        %2302 = vmatpush1.msra.mxu0 0.0
        %2303 = vmatprep.subr.mxu0 0.0
        %2304 = vmatpush1.msra.mxu0 0.0
        %2305 = vmatprep.subr.mxu0 0.0
        %2306 = vmatpush1.msra.mxu0 0.0
        %2307 = vmatprep.subr.mxu0 0.0
        %2308 = vmatpush1.msra.mxu0 0.0
        %2309 = vmatprep.subr.mxu0 0.0
        %2310 = vmatpush1.msra.mxu0 0.0
        %2311 = vmatprep.subr.mxu0 0.0
        %2312 = vmatpush1.msra.mxu0 %v2283
        %2313 = vmatprep.subr.mxu0 0.0
        %2314 = vmatpush1.msra.mxu0 %v2274
        %2315 = vmatprep.subr.mxu0 0.0
        %2316 = vmatpush1.msra.mxu0 %v2269
        %2317 = vmatprep.subr.mxu0 0.0
        %2318 = vmatpush2.msra.mxu0 0.0
        %2319 = vmatprep.subr.mxu0 0.0
        %2320 = vmatpush2.msra.mxu0 0.0
        %2321 = vmatprep.subr.mxu0 0.0
        %2322 = vmatpush2.msra.mxu0 0.0
        %2323 = vmatprep.subr.mxu0 0.0
        %2324 = vmatpush2.msra.mxu0 0.0
        %2325 = vmatprep.subr.mxu0 0.0
        %2326 = vmatpush2.msra.mxu0 0.0
        %2327 = vmatprep.subr.mxu0 0.0
        %2328 = vmatpush2.msra.mxu0 0.0
        %2329 = vmatprep.subr.mxu0 0.0
        %2330 = vmatpush2.msra.mxu0 0.0
        %2331 = vmatprep.subr.mxu0 0.0
        %2332 = vmatpush2.msra.mxu0 0.0
        %2333 = vmatprep.subr.mxu0 0.0
        %2334 = vmatpush2.msra.mxu0 0.0
        %2335 = vmatprep.subr.mxu0 0.0
        %2336 = vmatpush2.msra.mxu0 0.0
        %2337 = vmatprep.subr.mxu0 0.0
        %2338 = vmatpush2.msra.mxu0 0.0
        %2339 = vmatprep.subr.mxu0 0.0
        %2340 = vmatpush2.msra.mxu0 0.0
        %2341 = vmatprep.subr.mxu0 0.0
        %2342 = vmatpush2.msra.mxu0 0.0
        %2343 = vmatprep.subr.mxu0 0.0
        %2344 = vmatpush2.msra.mxu0 0.0
        %2345 = vmatprep.subr.mxu0 0.0
        %2346 = vmatpush2.msra.mxu0 0.0
        %2347 = vmatprep.subr.mxu0 0.0
        %2348 = vmatpush2.msra.mxu0 0.0
        %2349 = vmatprep.mubr.f32.mxu0 0.0
        %2350 = vmatmul.mubr.f32.gmra.mxu0 %v378
        %v2351 = vpop.f32.mrf.mxu0
        %v2352 = vadd.f32 0.0, %v2351
        %v2353 = vpop.f32.mrf.mxu0
        %2354 = vdwg.mxu0
        %v2356 = vsel %vm210, %v2199, 0
        %2358 = vmatprep.subr.mxu0 0.0
        %2359 = vmatpush1.msra.mxu0 0.0
        %2360 = vmatprep.subr.mxu0 0.0
        %2361 = vmatpush1.msra.mxu0 0.0
        %2362 = vmatprep.subr.mxu0 0.0
        %2363 = vmatpush1.msra.mxu0 0.0
        %2364 = vmatprep.subr.mxu0 0.0
        %2365 = vmatpush1.msra.mxu0 0.0
        %2366 = vmatprep.subr.mxu0 0.0
        %2367 = vmatpush1.msra.mxu0 0.0
        %2368 = vmatprep.subr.mxu0 0.0
        %2369 = vmatpush1.msra.mxu0 0.0
        %2370 = vmatprep.subr.mxu0 0.0
        %2371 = vmatpush1.msra.mxu0 0.0
        %2372 = vmatprep.subr.mxu0 0.0
        %2373 = vmatpush1.msra.mxu0 0.0
        %2374 = vmatprep.subr.mxu0 0.0
        %2375 = vmatpush1.msra.mxu0 0.0
        %2376 = vmatprep.subr.mxu0 0.0
        %2377 = vmatpush1.msra.mxu0 0.0
        %2378 = vmatprep.subr.mxu0 0.0
        %2379 = vmatpush1.msra.mxu0 0.0
        %2380 = vmatprep.subr.mxu0 0.0
        %2381 = vmatpush1.msra.mxu0 0.0
        %2382 = vmatprep.subr.mxu0 0.0
        %2383 = vmatpush1.msra.mxu0 0.0
        %2384 = vmatprep.subr.mxu0 0.0
        %2385 = vmatpush1.msra.mxu0 %v2356
        %2386 = vmatprep.subr.mxu0 0.0
        %2387 = vmatpush1.msra.mxu0 %v2194
        %2388 = vmatprep.subr.mxu0 0.0
        %2389 = vmatpush1.msra.mxu0 %v2189
        %2390 = vmatprep.subr.mxu0 0.0
        %2391 = vmatpush2.msra.mxu0 0.0
        %2392 = vmatprep.subr.mxu0 0.0
        %2393 = vmatpush2.msra.mxu0 0.0
        %2394 = vmatprep.subr.mxu0 0.0
        %2395 = vmatpush2.msra.mxu0 0.0
        %2396 = vmatprep.subr.mxu0 0.0
        %2397 = vmatpush2.msra.mxu0 0.0
        %2398 = vmatprep.subr.mxu0 0.0
        %2399 = vmatpush2.msra.mxu0 0.0
        %2400 = vmatprep.subr.mxu0 0.0
        %2401 = vmatpush2.msra.mxu0 0.0
        %2402 = vmatprep.subr.mxu0 0.0
        %2403 = vmatpush2.msra.mxu0 0.0
        %2404 = vmatprep.subr.mxu0 0.0
        %2405 = vmatpush2.msra.mxu0 0.0
        %2406 = vmatprep.subr.mxu0 0.0
        %2407 = vmatpush2.msra.mxu0 0.0
        %2408 = vmatprep.subr.mxu0 0.0
        %2409 = vmatpush2.msra.mxu0 0.0
        %2410 = vmatprep.subr.mxu0 0.0
        %2411 = vmatpush2.msra.mxu0 0.0
        %2412 = vmatprep.subr.mxu0 0.0
        %2413 = vmatpush2.msra.mxu0 0.0
        %2414 = vmatprep.subr.mxu0 0.0
        %2415 = vmatpush2.msra.mxu0 0.0
        %2416 = vmatprep.subr.mxu0 0.0
        %2417 = vmatpush2.msra.mxu0 0.0
        %2418 = vmatprep.subr.mxu0 0.0
        %2419 = vmatpush2.msra.mxu0 0.0
        %2420 = vmatprep.subr.mxu0 0.0
        %2421 = vmatpush2.msra.mxu0 0.0
        %2422 = vmatprep.mubr.f32.mxu0 0.0
        %2423 = vmatmul.mubr.f32.gmra.mxu0 %v454
        %v2424 = vpop.f32.mrf.mxu0
        %v2425 = vadd.f32 %v2352, %v2424
        %v2426 = vpop.f32.mrf.mxu0
        %2427 = vdwg.mxu0
        %2428 = vmatprep.subr.mxu0 0.0
        %2429 = vmatpush1.msra.mxu0 0.0
        %2430 = vmatprep.subr.mxu0 0.0
        %2431 = vmatpush1.msra.mxu0 0.0
        %2432 = vmatprep.subr.mxu0 0.0
        %2433 = vmatpush1.msra.mxu0 0.0
        %2434 = vmatprep.subr.mxu0 0.0
        %2435 = vmatpush1.msra.mxu0 0.0
        %2436 = vmatprep.subr.mxu0 0.0
        %2437 = vmatpush1.msra.mxu0 0.0
        %2438 = vmatprep.subr.mxu0 0.0
        %2439 = vmatpush1.msra.mxu0 0.0
        %2440 = vmatprep.subr.mxu0 0.0
        %2441 = vmatpush1.msra.mxu0 0.0
        %2442 = vmatprep.subr.mxu0 0.0
        %2443 = vmatpush1.msra.mxu0 0.0
        %2444 = vmatprep.subr.mxu0 0.0
        %2445 = vmatpush1.msra.mxu0 0.0
        %2446 = vmatprep.subr.mxu0 0.0
        %2447 = vmatpush1.msra.mxu0 0.0
        %2448 = vmatprep.subr.mxu0 0.0
        %2449 = vmatpush1.msra.mxu0 0.0
        %2450 = vmatprep.subr.mxu0 0.0
        %2451 = vmatpush1.msra.mxu0 0.0
        %2452 = vmatprep.subr.mxu0 0.0
        %2453 = vmatpush1.msra.mxu0 0.0
        %2454 = vmatprep.subr.mxu0 0.0
        %2455 = vmatpush1.msra.mxu0 %v530
        %2456 = vmatprep.subr.mxu0 0.0
        %2457 = vmatpush1.msra.mxu0 %v191
        %2458 = vmatprep.subr.mxu0 0.0
        %2459 = vmatpush1.msra.mxu0 %v190
        %2460 = vmatprep.subr.mxu0 0.0
        %2461 = vmatpush2.msra.mxu0 0.0
        %2462 = vmatprep.subr.mxu0 0.0
        %2463 = vmatpush2.msra.mxu0 0.0
        %2464 = vmatprep.subr.mxu0 0.0
        %2465 = vmatpush2.msra.mxu0 0.0
        %2466 = vmatprep.subr.mxu0 0.0
        %2467 = vmatpush2.msra.mxu0 0.0
        %2468 = vmatprep.subr.mxu0 0.0
        %2469 = vmatpush2.msra.mxu0 0.0
        %2470 = vmatprep.subr.mxu0 0.0
        %2471 = vmatpush2.msra.mxu0 0.0
        %2472 = vmatprep.subr.mxu0 0.0
        %2473 = vmatpush2.msra.mxu0 0.0
        %2474 = vmatprep.subr.mxu0 0.0
        %2475 = vmatpush2.msra.mxu0 0.0
        %2476 = vmatprep.subr.mxu0 0.0
        %2477 = vmatpush2.msra.mxu0 0.0
        %2478 = vmatprep.subr.mxu0 0.0
        %2479 = vmatpush2.msra.mxu0 0.0
        %2480 = vmatprep.subr.mxu0 0.0
        %2481 = vmatpush2.msra.mxu0 0.0
        %2482 = vmatprep.subr.mxu0 0.0
        %2483 = vmatpush2.msra.mxu0 0.0
        %2484 = vmatprep.subr.mxu0 0.0
        %2485 = vmatpush2.msra.mxu0 0.0
        %2486 = vmatprep.subr.mxu0 0.0
        %2487 = vmatpush2.msra.mxu0 0.0
        %2488 = vmatprep.subr.mxu0 0.0
        %2489 = vmatpush2.msra.mxu0 0.0
        %2490 = vmatprep.subr.mxu0 0.0
        %2491 = vmatpush2.msra.mxu0 0.0
        %2492 = vmatprep.mubr.f32.mxu0 0.0
        %2493 = vmatmul.mubr.f32.gmra.mxu0 %v2114
        %v2494 = vpop.f32.mrf.mxu0
        %v2495 = vadd.f32 0.0, %v2494
        %v2496 = vpop.f32.mrf.mxu0
        %2497 = vmatprep.mubr.f32.mxu0 0.0
        %2498 = vmatmul.mubr.f32.gmra.mxu0 %v2117
        %v2499 = vpop.f32.mrf.mxu0
        %v2500 = vadd.f32 0.0, %v2499
        %v2501 = vpop.f32.mrf.mxu0
        %2502 = vmatprep.mubr.f32.mxu0 0.0
        %2503 = vmatmul.mubr.f32.gmra.mxu0 %v2120
        %v2504 = vpop.f32.mrf.mxu0
        %v2505 = vadd.f32 0.0, %v2504
        %v2506 = vpop.f32.mrf.mxu0
        %2507 = vdwg.mxu0
        %v2509 = vsel %vm210, %v2505, 0
        %2511 = vmatprep.subr.mxu0 0.0
        %2512 = vmatpush1.msra.mxu0 0.0
        %2513 = vmatprep.subr.mxu0 0.0
        %2514 = vmatpush1.msra.mxu0 0.0
        %2515 = vmatprep.subr.mxu0 0.0
        %2516 = vmatpush1.msra.mxu0 0.0
        %2517 = vmatprep.subr.mxu0 0.0
        %2518 = vmatpush1.msra.mxu0 0.0
        %2519 = vmatprep.subr.mxu0 0.0
        %2520 = vmatpush1.msra.mxu0 0.0
        %2521 = vmatprep.subr.mxu0 0.0
        %2522 = vmatpush1.msra.mxu0 0.0
        %2523 = vmatprep.subr.mxu0 0.0
        %2524 = vmatpush1.msra.mxu0 0.0
        %2525 = vmatprep.subr.mxu0 0.0
        %2526 = vmatpush1.msra.mxu0 0.0
        %2527 = vmatprep.subr.mxu0 0.0
        %2528 = vmatpush1.msra.mxu0 0.0
        %2529 = vmatprep.subr.mxu0 0.0
        %2530 = vmatpush1.msra.mxu0 0.0
        %2531 = vmatprep.subr.mxu0 0.0
        %2532 = vmatpush1.msra.mxu0 0.0
        %2533 = vmatprep.subr.mxu0 0.0
        %2534 = vmatpush1.msra.mxu0 0.0
        %2535 = vmatprep.subr.mxu0 0.0
        %2536 = vmatpush1.msra.mxu0 0.0
        %2537 = vmatprep.subr.mxu0 0.0
        %2538 = vmatpush1.msra.mxu0 %v2509
        %2539 = vmatprep.subr.mxu0 0.0
        %2540 = vmatpush1.msra.mxu0 %v2500
        %2541 = vmatprep.subr.mxu0 0.0
        %2542 = vmatpush1.msra.mxu0 %v2495
        %2543 = vmatprep.subr.mxu0 0.0
        %2544 = vmatpush2.msra.mxu0 0.0
        %2545 = vmatprep.subr.mxu0 0.0
        %2546 = vmatpush2.msra.mxu0 0.0
        %2547 = vmatprep.subr.mxu0 0.0
        %2548 = vmatpush2.msra.mxu0 0.0
        %2549 = vmatprep.subr.mxu0 0.0
        %2550 = vmatpush2.msra.mxu0 0.0
        %2551 = vmatprep.subr.mxu0 0.0
        %2552 = vmatpush2.msra.mxu0 0.0
        %2553 = vmatprep.subr.mxu0 0.0
        %2554 = vmatpush2.msra.mxu0 0.0
        %2555 = vmatprep.subr.mxu0 0.0
        %2556 = vmatpush2.msra.mxu0 0.0
        %2557 = vmatprep.subr.mxu0 0.0
        %2558 = vmatpush2.msra.mxu0 0.0
        %2559 = vmatprep.subr.mxu0 0.0
        %2560 = vmatpush2.msra.mxu0 0.0
        %2561 = vmatprep.subr.mxu0 0.0
        %2562 = vmatpush2.msra.mxu0 0.0
        %2563 = vmatprep.subr.mxu0 0.0
        %2564 = vmatpush2.msra.mxu0 0.0
        %2565 = vmatprep.subr.mxu0 0.0
        %2566 = vmatpush2.msra.mxu0 0.0
        %2567 = vmatprep.subr.mxu0 0.0
        %2568 = vmatpush2.msra.mxu0 0.0
        %2569 = vmatprep.subr.mxu0 0.0
        %2570 = vmatpush2.msra.mxu0 0.0
        %2571 = vmatprep.subr.mxu0 0.0
        %2572 = vmatpush2.msra.mxu0 0.0
        %2573 = vmatprep.subr.mxu0 0.0
        %2574 = vmatpush2.msra.mxu0 0.0
        %2575 = vmatprep.mubr.f32.mxu0 0.0
        %2576 = vmatmul.mubr.f32.gmra.mxu0 %v613
        %v2577 = vpop.f32.mrf.mxu0
        %v2578 = vadd.f32 0.0, %v2577
        %v2579 = vpop.f32.mrf.mxu0
        %2580 = vdwg.mxu0
        %v2581 = vadd.f32 %v2425, %v2578
        %2582 = vmatprep.subr.mxu0 0.0
        %2583 = vmatpush1.msra.mxu0 0.0
        %2584 = vmatprep.subr.mxu0 0.0
        %2585 = vmatpush1.msra.mxu0 0.0
        %2586 = vmatprep.subr.mxu0 0.0
        %2587 = vmatpush1.msra.mxu0 0.0
        %2588 = vmatprep.subr.mxu0 0.0
        %2589 = vmatpush1.msra.mxu0 0.0
        %2590 = vmatprep.subr.mxu0 0.0
        %2591 = vmatpush1.msra.mxu0 0.0
        %2592 = vmatprep.subr.mxu0 0.0
        %2593 = vmatpush1.msra.mxu0 0.0
        %2594 = vmatprep.subr.mxu0 0.0
        %2595 = vmatpush1.msra.mxu0 0.0
        %2596 = vmatprep.subr.mxu0 0.0
        %2597 = vmatpush1.msra.mxu0 0.0
        %2598 = vmatprep.subr.mxu0 0.0
        %2599 = vmatpush1.msra.mxu0 0.0
        %2600 = vmatprep.subr.mxu0 0.0
        %2601 = vmatpush1.msra.mxu0 0.0
        %2602 = vmatprep.subr.mxu0 0.0
        %2603 = vmatpush1.msra.mxu0 0.0
        %2604 = vmatprep.subr.mxu0 0.0
        %2605 = vmatpush1.msra.mxu0 0.0
        %2606 = vmatprep.subr.mxu0 0.0
        %2607 = vmatpush1.msra.mxu0 0.0
        %2608 = vmatprep.subr.mxu0 0.0
        %2609 = vmatpush1.msra.mxu0 %v690
        %2610 = vmatprep.subr.mxu0 0.0
        %2611 = vmatpush1.msra.mxu0 %v195
        %2612 = vmatprep.subr.mxu0 0.0
        %2613 = vmatpush1.msra.mxu0 %v194
        %2614 = vmatprep.subr.mxu0 0.0
        %2615 = vmatpush2.msra.mxu0 0.0
        %2616 = vmatprep.subr.mxu0 0.0
        %2617 = vmatpush2.msra.mxu0 0.0
        %2618 = vmatprep.subr.mxu0 0.0
        %2619 = vmatpush2.msra.mxu0 0.0
        %2620 = vmatprep.subr.mxu0 0.0
        %2621 = vmatpush2.msra.mxu0 0.0
        %2622 = vmatprep.subr.mxu0 0.0
        %2623 = vmatpush2.msra.mxu0 0.0
        %2624 = vmatprep.subr.mxu0 0.0
        %2625 = vmatpush2.msra.mxu0 0.0
        %2626 = vmatprep.subr.mxu0 0.0
        %2627 = vmatpush2.msra.mxu0 0.0
        %2628 = vmatprep.subr.mxu0 0.0
        %2629 = vmatpush2.msra.mxu0 0.0
        %2630 = vmatprep.subr.mxu0 0.0
        %2631 = vmatpush2.msra.mxu0 0.0
        %2632 = vmatprep.subr.mxu0 0.0
        %2633 = vmatpush2.msra.mxu0 0.0
        %2634 = vmatprep.subr.mxu0 0.0
        %2635 = vmatpush2.msra.mxu0 0.0
        %2636 = vmatprep.subr.mxu0 0.0
        %2637 = vmatpush2.msra.mxu0 0.0
        %2638 = vmatprep.subr.mxu0 0.0
        %2639 = vmatpush2.msra.mxu0 0.0
        %2640 = vmatprep.subr.mxu0 0.0
        %2641 = vmatpush2.msra.mxu0 0.0
        %2642 = vmatprep.subr.mxu0 0.0
        %2643 = vmatpush2.msra.mxu0 0.0
        %2644 = vmatprep.subr.mxu0 0.0
        %2645 = vmatpush2.msra.mxu0 0.0
        %2646 = vmatprep.mubr.f32.mxu0 0.0
        %2647 = vmatmul.mubr.f32.gmra.mxu0 %v2114
        %v2648 = vpop.f32.mrf.mxu0
        %v2649 = vadd.f32 0.0, %v2648
        %v2650 = vpop.f32.mrf.mxu0
        %2651 = vmatprep.mubr.f32.mxu0 0.0
        %2652 = vmatmul.mubr.f32.gmra.mxu0 %v2117
        %v2653 = vpop.f32.mrf.mxu0
        %v2654 = vadd.f32 0.0, %v2653
        %v2655 = vpop.f32.mrf.mxu0
        %2656 = vmatprep.mubr.f32.mxu0 0.0
        %2657 = vmatmul.mubr.f32.gmra.mxu0 %v2120
        %v2658 = vpop.f32.mrf.mxu0
        %v2659 = vadd.f32 0.0, %v2658
        %v2660 = vpop.f32.mrf.mxu0
        %2661 = vdwg.mxu0
        %v2663 = vsel %vm210, %v2659, 0
        %2665 = vmatprep.subr.mxu0 0.0
        %2666 = vmatpush1.msra.mxu0 0.0
        %2667 = vmatprep.subr.mxu0 0.0
        %2668 = vmatpush1.msra.mxu0 0.0
        %2669 = vmatprep.subr.mxu0 0.0
        %2670 = vmatpush1.msra.mxu0 0.0
        %2671 = vmatprep.subr.mxu0 0.0
        %2672 = vmatpush1.msra.mxu0 0.0
        %2673 = vmatprep.subr.mxu0 0.0
        %2674 = vmatpush1.msra.mxu0 0.0
        %2675 = vmatprep.subr.mxu0 0.0
        %2676 = vmatpush1.msra.mxu0 0.0
        %2677 = vmatprep.subr.mxu0 0.0
        %2678 = vmatpush1.msra.mxu0 0.0
        %2679 = vmatprep.subr.mxu0 0.0
        %2680 = vmatpush1.msra.mxu0 0.0
        %2681 = vmatprep.subr.mxu0 0.0
        %2682 = vmatpush1.msra.mxu0 0.0
        %2683 = vmatprep.subr.mxu0 0.0
        %2684 = vmatpush1.msra.mxu0 0.0
        %2685 = vmatprep.subr.mxu0 0.0
        %2686 = vmatpush1.msra.mxu0 0.0
        %2687 = vmatprep.subr.mxu0 0.0
        %2688 = vmatpush1.msra.mxu0 0.0
        %2689 = vmatprep.subr.mxu0 0.0
        %2690 = vmatpush1.msra.mxu0 0.0
        %2691 = vmatprep.subr.mxu0 0.0
        %2692 = vmatpush1.msra.mxu0 %v2663
        %2693 = vmatprep.subr.mxu0 0.0
        %2694 = vmatpush1.msra.mxu0 %v2654
        %2695 = vmatprep.subr.mxu0 0.0
        %2696 = vmatpush1.msra.mxu0 %v2649
        %2697 = vmatprep.subr.mxu0 0.0
        %2698 = vmatpush2.msra.mxu0 0.0
        %2699 = vmatprep.subr.mxu0 0.0
        %2700 = vmatpush2.msra.mxu0 0.0
        %2701 = vmatprep.subr.mxu0 0.0
        %2702 = vmatpush2.msra.mxu0 0.0
        %2703 = vmatprep.subr.mxu0 0.0
        %2704 = vmatpush2.msra.mxu0 0.0
        %2705 = vmatprep.subr.mxu0 0.0
        %2706 = vmatpush2.msra.mxu0 0.0
        %2707 = vmatprep.subr.mxu0 0.0
        %2708 = vmatpush2.msra.mxu0 0.0
        %2709 = vmatprep.subr.mxu0 0.0
        %2710 = vmatpush2.msra.mxu0 0.0
        %2711 = vmatprep.subr.mxu0 0.0
        %2712 = vmatpush2.msra.mxu0 0.0
        %2713 = vmatprep.subr.mxu0 0.0
        %2714 = vmatpush2.msra.mxu0 0.0
        %2715 = vmatprep.subr.mxu0 0.0
        %2716 = vmatpush2.msra.mxu0 0.0
        %2717 = vmatprep.subr.mxu0 0.0
        %2718 = vmatpush2.msra.mxu0 0.0
        %2719 = vmatprep.subr.mxu0 0.0
        %2720 = vmatpush2.msra.mxu0 0.0
        %2721 = vmatprep.subr.mxu0 0.0
        %2722 = vmatpush2.msra.mxu0 0.0
        %2723 = vmatprep.subr.mxu0 0.0
        %2724 = vmatpush2.msra.mxu0 0.0
        %2725 = vmatprep.subr.mxu0 0.0
        %2726 = vmatpush2.msra.mxu0 0.0
        %2727 = vmatprep.subr.mxu0 0.0
        %2728 = vmatpush2.msra.mxu0 0.0
        %2729 = vmatprep.mubr.f32.mxu0 0.0
        %2730 = vmatmul.mubr.f32.gmra.mxu0 %v773
        %v2731 = vpop.f32.mrf.mxu0
        %v2732 = vadd.f32 0.0, %v2731
        %v2733 = vpop.f32.mrf.mxu0
        %2734 = vdwg.mxu0
        %v2735 = vadd.f32 %v2581, %v2732
        %s2736 = scalar_lea.vmem %s166, 24 [#allocation2]
        %2737 = vst.msk [vmem:[%s2736] sm:$0xff] %vm849, %v2735
        %s2738 = sand.u32 %s93, 1
        %s2739 = scalar_lea.sflag [#allocation3], %s2738
        %s2740 = sand.u32 %s93, 1
        %s2741 = smul.addr %s2740, 32
        %s2742 = scalar_lea.vmem [#allocation2], %s2741
        // Predicated region
        $region33: #{tpu_custom_call.1} parent=31 // pred_check
          %p2743 = pneg %p103
        $region34: #{tpu_custom_call.1} parent=31 // pred_check_branch
          %2745 = sbr.rel (%p2743) target = $region36
        $region35: #{tpu_custom_call.1} parent=31 // pred_region
          %s2746 = smul.u32 4, %s17
          %s2748 = ssub.s32 512, 512
          %2749 = vsyncadd %s2739, %s2748
          %s2750 = smul.addr %s2746, 128
          %s2751 = scalar_lea.hbm %s3, %s2750
          %s2752 = sshll.u32 %s2742, 4
          %s2753 = int_to_ptr.vmem [resolvable:$true] %s2752
          %2758 = dma.vmem_to_hbm [thread:$0]  %s2753, 512, %s2751, %s2739, 128, 128, 8
        $region36: #{tpu_custom_call.1} parent=31 // pred_fallthru
          _
      $region32: #{tpu_custom_call.1} parent=5 // pred_fallthru
        _
      %p2759 = scmp.le.s32.totalorder 2, %s12
      // Predicated region
      $region37: #{tpu_custom_call.1} parent=5 // pred_check
        %p2760 = pneg %p2759
      $region38: #{tpu_custom_call.1} parent=5 // pred_check_branch
        %2762 = sbr.rel (%p2760) target = $region40
      $region39: #{tpu_custom_call.1} parent=5 // pred_region
        %s2763 = ssub.s32 %s12, 2
        // Predicated region
        $region41: #{tpu_custom_call.1} parent=39 // pred_check
          %p2764 = pneg %p109
        $region42: #{tpu_custom_call.1} parent=39 // pred_check_branch
          %2766 = sbr.rel (%p2764) target = $region44
        $region43: #{tpu_custom_call.1} parent=39 // pred_region
          %s2767 = sand.u32 %s94, 1
          %s2768 = scalar_lea.sflag [#allocation3], %s2767
          %s2769 = sand.u32 %s94, 1
          %s2770 = smul.addr %s2769, 32
          %s2771 = scalar_lea.vmem [#allocation2], %s2770
          %2772 = dma.done %s2768, 512
        $region44: #{tpu_custom_call.1} parent=39 // pred_fallthru
          _
      $region40: #{tpu_custom_call.1} parent=5 // pred_fallthru
        _
    $region6: #{tpu_custom_call.1} parent=1 // loop_footer
      %s16 = sadd.s32 1, %s12
    $region7: #{tpu_custom_call.1} parent=1 // loop_footer_branch
      %11 = sbr.rel target = $region3
    $region8: #{tpu_custom_call.1} parent=1 // loop_exit
      _
    %2773 = vsyncpa [#allocation3], 1
    %s2774 = scalar_lea.sflag [#allocation3], 1
    %2775 = vsyncpa %s2774, 1

</llo_original>
